<compile_context>
chip_gen: v7x
topology: tpu7x:2x2x1
jax: 0.10.0
libtpu: 0.0.40
codegen_flags: <defaults>
</compile_context>

<pallas_src>
import numpy as np

import jax
import jax.numpy as jnp
from jax.experimental import pallas as pl
from jax.experimental.pallas import tpu as pltpu


def _round_up(v, m):
    return (v + m - 1) // m * m


def _make_kernel(tap_offsets, Cp, Lflat, apply_norm, apply_activation,
                 emit_residual, inv_count, eps=1e-5, slope=0.02):
    n_out = 2 if emit_residual else 1

    def kernel(*refs):
        # refs: x, w, bias, gamma, beta, mask, out[, res], scratch
        # x_ref:    (1, Cp, Lflat)          padded input, flat spatial on lanes
        # w_ref:    (Cout, KH*KW*Cp)        tap-folded conv weights
        # b_ref:    (Cout, 1)  g_ref/bt_ref (Cout, 1)   conv bias / GN affine
        # mask_ref: (1, Lflat)              1.0 at flat positions that are outputs
        # scr_ref:  (KH*KW*Cp, Lflat)       stacked shifted slabs (compute dtype)
        x_ref, w_ref, b_ref, g_ref, bt_ref, mask_ref = refs[:6]
        out_refs = refs[6:6 + n_out]
        scr_ref = refs[6 + n_out]

        x = x_ref[0]                                       # (Cp, Lflat)
        # Stack the shifted copies of the resident slab into the VMEM scratch,
        # rolled directly in the compute dtype (XLU work, no casts).
        for t, off in enumerate(tap_offsets):
            rows = pl.ds(t * Cp, Cp)                       # static, tile-aligned
            if off == 0:
                scr_ref[rows, :] = x
            else:
                # shifted[p] = x[p + off]; wrap never reaches a valid lane
                # (see the assert in conv_layer_forward).
                scr_ref[rows, :] = pltpu.roll(x, Lflat - off, 1)

        # One matmul with K = KH*KW*Cp instead of KH*KW matmuls with K = Cin.
        acc = jnp.dot(w_ref[...], scr_ref[...],
                      preferred_element_type=jnp.float32)   # (Cout, Lflat) f32
        acc = acc + b_ref[...]                              # conv bias

        out = acc
        if apply_norm:
            # Masked GroupNorm(1, C), two-pass (mean, then centered sum-of-
            # squares) with lane-first reductions; junk lanes masked out.
            m = mask_ref[...]                               # (1, Lflat)
            am = acc * m
            mean = jnp.sum(jnp.sum(am, axis=1, keepdims=True)) * inv_count
            d = (acc - mean) * m
            var = jnp.sum(jnp.sum(d * d, axis=1, keepdims=True)) * inv_count
            scale = jax.lax.rsqrt(var + eps)
            a = g_ref[...] * scale                          # (Cout, 1)
            b = bt_ref[...] - mean * a                      # (Cout, 1)
            out = acc * a + b                               # fused norm + affine
        if apply_activation:
            out = jnp.maximum(out, slope * out)             # LeakyReLU(0.02)
        out_refs[0][0] = out.astype(out_refs[0].dtype)

        if emit_residual:
            res = acc
            if apply_activation:
                res = jnp.maximum(res, slope * res)
            out_refs[1][0] = res.astype(out_refs[1].dtype)

    return kernel


def conv_layer_forward(x, weight, bias, gamma, beta, *, stride=1,
                       apply_norm=True, apply_activation=True, residual=False,
                       compute_dtype=jnp.bfloat16, out_dtype=None):
    """Pallas implementation of ConvLayer.forward.  x is NCHW."""
    N, Cin, H, W = x.shape
    Cout, _, KH, KW = weight.shape
    ph, pw = KH // 2, KW // 2
    Hp, Wp = H + 2 * ph, W + 2 * pw
    Ho = (H + 2 * ph - KH) // stride + 1
    Wo = (W + 2 * pw - KW) // stride + 1
    Lspat = Hp * Wp
    Lflat = _round_up(Lspat, 128)               # lane-dense flattened spatial
    out_dtype = x.dtype if out_dtype is None else out_dtype

    in_item = jnp.dtype(compute_dtype).itemsize
    out_item = jnp.dtype(out_dtype).itemsize
    sub = 8 * max(1, 4 // in_item)              # sublane multiple for compute dtype
    Cp = _round_up(Cin, sub)                    # tile-aligned channel count
    n_taps = KH * KW
    tap_offsets = tuple(kh * Wp + kw for kh in range(KH) for kw in range(KW))

    # Roll-wrap safety invariant: the furthest flat read of any valid output
    # position must stay inside the real padded plane (< Lspat <= Lflat).
    assert ((Ho - 1) * stride * Wp + (Wo - 1) * stride + tap_offsets[-1]
            < Lspat), "roll wrap-around would alias into valid output lanes"

    # --- glue (pure data movement): replicate pad, flatten, pad channels/lanes.
    # TODO(synk): move replicate padding (and the final crop) into the kernel
    #   once halo row-band tiling lands, to avoid this extra HBM round trip.
    xp = jnp.pad(x.astype(compute_dtype),
                 ((0, 0), (0, 0), (ph, ph), (pw, pw)), mode="edge")
    x_flat = xp.reshape(N, Cin, Lspat)
    x_flat = jnp.pad(x_flat, ((0, 0), (0, Cp - Cin), (0, Lflat - Lspat)))

    # Tap-folded weights: w2[o, t*Cp + c] = weight[o, c, kh, kw], t = kh*KW + kw.
    w_t = jnp.transpose(weight.astype(compute_dtype), (2, 3, 0, 1))
    w_t = w_t.reshape(n_taps, Cout, Cin)
    w_t = jnp.pad(w_t, ((0, 0), (0, 0), (0, Cp - Cin)))
    w2 = jnp.transpose(w_t, (1, 0, 2)).reshape(Cout, n_taps * Cp)

    b2 = bias.reshape(Cout, 1).astype(jnp.float32)
    g2 = gamma.reshape(Cout, 1).astype(jnp.float32)
    bt2 = beta.reshape(Cout, 1).astype(jnp.float32)

    # Static 0/1 mask of flat padded positions that are real (strided) outputs.
    hh = np.arange(Lspat) // Wp
    ww = np.arange(Lspat) % Wp
    valid = ((hh % stride == 0) & (hh // stride < Ho) &
             (ww % stride == 0) & (ww // stride < Wo))
    mask_np = np.zeros((1, Lflat), np.float32)
    mask_np[0, :Lspat] = valid.astype(np.float32)
    mask = jnp.asarray(mask_np)
    inv_count = 1.0 / float(Cout * Ho * Wo)

    # residual with apply_norm=False: out == res, so only one plane is emitted.
    emit_residual = residual and apply_norm
    n_out = 2 if emit_residual else 1

    kernel = _make_kernel(tap_offsets, Cp, Lflat, apply_norm, apply_activation,
                          emit_residual, inv_count)

    # Per-step resident set: streamed input / output(s) double-buffered,
    # constants (single-buffered when supported), stacked-slab scratch, and the
    # in-kernel f32 temporaries (acc / centered / out), with modest headroom.
    est = (2 * Cp * Lflat * in_item                       # input block (x2 buf)
           + 2 * n_out * Cout * Lflat * out_item          # output block(s) (x2)
           + n_taps * Cp * Cout * in_item                 # weights
           + 3 * Cout * 4 + Lflat * 4                     # bias/gamma/beta/mask
           + n_taps * Cp * Lflat * in_item                # stacked-slab scratch
           + 3 * Cout * Lflat * 4)                        # f32 temporaries
    try:
        vmem_cap = int(pltpu.get_tpu_info().vmem_capacity_bytes)
    except Exception:  # conservative default if the query is unavailable
        vmem_cap = 128 * 2 ** 20
    vmem_limit = int(min(int(0.8 * vmem_cap),             # ~51 MiB v7x, ~102 MiB v6e/v5e
                         max(32 * 2 ** 20, int(1.5 * est))))
    # TODO(synk): switch to halo row-band tiling (carried sum/sumsq) when est
    #   exceeds the generation cap; hits first on v7x's 64 MiB VMEM.

    out_struct = jax.ShapeDtypeStruct((N, Cout, Lflat), out_dtype)
    out_spec = pl.BlockSpec((1, Cout, Lflat), lambda n: (n, 0, 0))
    out_shape = (out_struct,) * n_out if emit_residual else out_struct
    out_specs = (out_spec,) * n_out if emit_residual else out_spec

    def build(single_buffer_constants):
        def const_spec(shape):
            nd = len(shape)
            idx = lambda n, _nd=nd: (0,) * _nd            # grid-invariant
            if single_buffer_constants:
                return pl.BlockSpec(shape, idx, pipeline_mode=pl.Buffered(1))
            return pl.BlockSpec(shape, idx)

        return pl.pallas_call(
            kernel,
            out_shape=out_shape,
            grid=(N,),
            in_specs=[
                pl.BlockSpec((1, Cp, Lflat), lambda n: (n, 0, 0)),
                const_spec((Cout, n_taps * Cp)),
                const_spec((Cout, 1)),
                const_spec((Cout, 1)),
                const_spec((Cout, 1)),
                const_spec((1, Lflat)),
            ],
            out_specs=out_specs,
            scratch_shapes=[pltpu.VMEM((n_taps * Cp, Lflat), compute_dtype)],
            compiler_params=pltpu.CompilerParams(
                # TODO(synk): add a 2nd "parallel" axis for v7x when N is 1 or
                #   odd (needs a carried cross-tile GroupNorm reduction).
                dimension_semantics=("parallel",),
                vmem_limit_bytes=vmem_limit),
        )

    try:
        # Preferred config: grid-invariant operands single-buffered (saves the
        # 2nd weight buffer, which matters under v7x's 64 MiB VMEM).
        result = build(True)(x_flat, w2, b2, g2, bt2, mask)
    except Exception:
        # Fallback: default double buffering if this Pallas build rejects
        # pipeline_mode=pl.Buffered(1) on top-level BlockSpecs.
        result = build(False)(x_flat, w2, b2, g2, bt2, mask)

    def crop(o):
        o4 = o[:, :, :Lspat].reshape(N, Cout, Hp, Wp)
        return o4[:, :, ::stride, ::stride][:, :, :Ho, :Wo]

    if not residual:
        return crop(result)
    if emit_residual:
        return crop(result[0]), crop(result[1])
    out = crop(result)
    return out, out            # apply_norm=False: out and res are identical


def conv_layer_reference(x, weight, bias, gamma, beta, *, stride=1,
                         apply_norm=True, apply_activation=True,
                         residual=False, eps=1e-5, slope=0.02):
    """Pure-JAX reference mirroring the PyTorch forward semantics."""
    KH, KW = weight.shape[2], weight.shape[3]
    ph, pw = KH // 2, KW // 2
    xp = jnp.pad(x, ((0, 0), (0, 0), (ph, ph), (pw, pw)), mode="edge")
    out = jax.lax.conv_general_dilated(
        xp, weight, window_strides=(stride, stride), padding="VALID",
        dimension_numbers=("NCHW", "OIHW", "NCHW"))
    out = out + bias[None, :, None, None]
    res = out
    if apply_norm:
        mean = out.mean(axis=(1, 2, 3), keepdims=True)
        var = jnp.square(out - mean).mean(axis=(1, 2, 3), keepdims=True)
        out = (out - mean) * jax.lax.rsqrt(var + eps)
        out = out * gamma[None, :, None, None] + beta[None, :, None, None]
    if apply_activation:
        out = jnp.where(out >= 0, out, slope * out)
        res = jnp.where(res >= 0, res, slope * res)
    return (out, res) if residual else out


if __name__ == "__main__":
    # ConvLayer(in=4, out=8, kernel=3, stride=1) on a small deterministic input.
    N, Cin, H, W = 2, 4, 16, 16
    Cout, KH, KW = 8, 3, 3

    key = jax.random.PRNGKey(0)
    kx, kw_, kb, kg, kbt = jax.random.split(key, 5)
    x = jax.random.normal(kx, (N, Cin, H, W), dtype=jnp.float32)
    weight = 0.1 * jax.random.normal(kw_, (Cout, Cin, KH, KW), dtype=jnp.float32)
    bias = 0.1 * jax.random.normal(kb, (Cout,), dtype=jnp.float32)
    gamma = 1.0 + 0.1 * jax.random.normal(kg, (Cout,), dtype=jnp.float32)
    beta = 0.1 * jax.random.normal(kbt, (Cout,), dtype=jnp.float32)

    ref = conv_layer_reference(x, weight, bias, gamma, beta, stride=1)

    # 1) f32 compute path: tight algorithmic check against the reference.
    out_f32 = conv_layer_forward(x, weight, bias, gamma, beta, stride=1,
                                 compute_dtype=jnp.float32)
    out_f32 = jax.block_until_ready(out_f32)
    np.testing.assert_allclose(np.asarray(out_f32), np.asarray(ref),
                               rtol=1e-4, atol=1e-4)

    # 2) Default perf path: bf16 matmul operands, f32 accumulation.
    out_bf = conv_layer_forward(x, weight, bias, gamma, beta, stride=1)
    out_bf = jax.block_until_ready(out_bf)
    np.testing.assert_allclose(np.asarray(out_bf), np.asarray(ref),
                               rtol=5e-2, atol=5e-2)

    # 3) Residual configuration (norm on): returns distinct (out, res).
    out_r, res_r = conv_layer_forward(x, weight, bias, gamma, beta, stride=1,
                                      residual=True)
    out_r = jax.block_until_ready(out_r)
    res_r = jax.block_until_ready(res_r)
    ref_out_r, ref_res_r = conv_layer_reference(x, weight, bias, gamma, beta,
                                                stride=1, residual=True)
    np.testing.assert_allclose(np.asarray(out_r), np.asarray(ref_out_r),
                               rtol=5e-2, atol=5e-2)
    np.testing.assert_allclose(np.asarray(res_r), np.asarray(ref_res_r),
                               rtol=5e-2, atol=5e-2)

    # 4) Strided configuration (masked-stats / strided crop path).
    out_s2 = conv_layer_forward(x, weight, bias, gamma, beta, stride=2,
                                compute_dtype=jnp.float32)
    out_s2 = jax.block_until_ready(out_s2)
    ref_s2 = conv_layer_reference(x, weight, bias, gamma, beta, stride=2)
    np.testing.assert_allclose(np.asarray(out_s2), np.asarray(ref_s2),
                               rtol=1e-4, atol=1e-4)

    # 5) Residual with apply_norm=False: deduplicated single-plane path.
    out_nn, res_nn = conv_layer_forward(x, weight, bias, gamma, beta, stride=1,
                                        apply_norm=False, residual=True,
                                        compute_dtype=jnp.float32)
    out_nn = jax.block_until_ready(out_nn)
    res_nn = jax.block_until_ready(res_nn)
    ref_out_nn, ref_res_nn = conv_layer_reference(x, weight, bias, gamma, beta,
                                                  stride=1, apply_norm=False,
                                                  residual=True)
    np.testing.assert_allclose(np.asarray(out_nn), np.asarray(ref_out_nn),
                               rtol=1e-4, atol=1e-4)
    np.testing.assert_allclose(np.asarray(res_nn), np.asarray(ref_res_nn),
                               rtol=1e-4, atol=1e-4)

    print("KERNEL_OK")
</pallas_src>

<mosaic_0001>
module attributes {stable_mosaic.version = 11 : i64} {
  func.func @kernel(%arg0: i32, %arg1: memref<1x8x384xf32, #tpu.memory_space<vmem>>, %arg2: memref<8x72xf32, #tpu.memory_space<vmem>>, %arg3: memref<8x1xf32, #tpu.memory_space<vmem>>, %arg4: memref<8x1xf32, #tpu.memory_space<vmem>>, %arg5: memref<8x1xf32, #tpu.memory_space<vmem>>, %arg6: memref<1x384xf32, #tpu.memory_space<vmem>>, %arg7: memref<1x8x384xf32, #tpu.memory_space<vmem>>, %arg8: memref<72x384xf32, #tpu.memory_space<vmem>>) attributes {dimension_semantics = [#tpu.dimension_semantics<parallel>], iteration_bounds = array<i64: 2>, scalar_prefetch = 0 : i64, scratch_operands = 1 : i64, tpu.core_type = #tpu.core_type<tc>, window_params = [{transform_indices = @transform_0, window_bounds = array<i64: 1, 8, 384>}, {pipeline_mode = #tpu.pipeline_mode<synchronous>, transform_indices = @transform_1, window_bounds = array<i64: 8, 72>}, {pipeline_mode = #tpu.pipeline_mode<synchronous>, transform_indices = @transform_2, window_bounds = array<i64: 8, 1>}, {pipeline_mode = #tpu.pipeline_mode<synchronous>, transform_indices = @transform_3, window_bounds = array<i64: 8, 1>}, {pipeline_mode = #tpu.pipeline_mode<synchronous>, transform_indices = @transform_4, window_bounds = array<i64: 8, 1>}, {pipeline_mode = #tpu.pipeline_mode<synchronous>, transform_indices = @transform_5, window_bounds = array<i64: 1, 384>}, {transform_indices = @transform_6, window_bounds = array<i64: 1, 8, 384>}]} {
    %c0 = arith.constant 0 : index
    %c0_0 = arith.constant 0 : index
    %c0_1 = arith.constant 0 : index
    %0 = vector.load %arg1[%c0, %c0_0, %c0_1] : memref<1x8x384xf32, #tpu.memory_space<vmem>>, vector<1x8x384xf32>
    %1 = vector.shape_cast %0 : vector<1x8x384xf32> to vector<8x384xf32>
    %c0_2 = arith.constant 0 : index
    %c0_3 = arith.constant 0 : index
    %2 = vector.load %arg8[%c0_2, %c0_3] : memref<72x384xf32, #tpu.memory_space<vmem>>, vector<8x384xf32>
    tpu.vector_store %arg8[%c0_2, %c0_3], %1 {strides = array<i32>} : memref<72x384xf32, #tpu.memory_space<vmem>>, vector<8x384xf32>,
    %c383_i32 = arith.constant 383 : i32
    %3 = tpu.dynamic_rotate %1 by %c383_i32 dim 1 : vector<8x384xf32>, i32 -> vector<8x384xf32>
    %c8 = arith.constant 8 : index
    %c0_4 = arith.constant 0 : index
    %4 = vector.load %arg8[%c8, %c0_4] : memref<72x384xf32, #tpu.memory_space<vmem>>, vector<8x384xf32>
    tpu.vector_store %arg8[%c8, %c0_4], %3 {strides = array<i32>} : memref<72x384xf32, #tpu.memory_space<vmem>>, vector<8x384xf32>,
    %c382_i32 = arith.constant 382 : i32
    %5 = tpu.dynamic_rotate %1 by %c382_i32 dim 1 : vector<8x384xf32>, i32 -> vector<8x384xf32>
    %c16 = arith.constant 16 : index
    %c0_5 = arith.constant 0 : index
    %6 = vector.load %arg8[%c16, %c0_5] : memref<72x384xf32, #tpu.memory_space<vmem>>, vector<8x384xf32>
    tpu.vector_store %arg8[%c16, %c0_5], %5 {strides = array<i32>} : memref<72x384xf32, #tpu.memory_space<vmem>>, vector<8x384xf32>,
    %c366_i32 = arith.constant 366 : i32
    %7 = tpu.dynamic_rotate %1 by %c366_i32 dim 1 : vector<8x384xf32>, i32 -> vector<8x384xf32>
    %c24 = arith.constant 24 : index
    %c0_6 = arith.constant 0 : index
    %8 = vector.load %arg8[%c24, %c0_6] : memref<72x384xf32, #tpu.memory_space<vmem>>, vector<8x384xf32>
    tpu.vector_store %arg8[%c24, %c0_6], %7 {strides = array<i32>} : memref<72x384xf32, #tpu.memory_space<vmem>>, vector<8x384xf32>,
    %c365_i32 = arith.constant 365 : i32
    %9 = tpu.dynamic_rotate %1 by %c365_i32 dim 1 : vector<8x384xf32>, i32 -> vector<8x384xf32>
    %c32 = arith.constant 32 : index
    %c0_7 = arith.constant 0 : index
    %10 = vector.load %arg8[%c32, %c0_7] : memref<72x384xf32, #tpu.memory_space<vmem>>, vector<8x384xf32>
    tpu.vector_store %arg8[%c32, %c0_7], %9 {strides = array<i32>} : memref<72x384xf32, #tpu.memory_space<vmem>>, vector<8x384xf32>,
    %c364_i32 = arith.constant 364 : i32
    %11 = tpu.dynamic_rotate %1 by %c364_i32 dim 1 : vector<8x384xf32>, i32 -> vector<8x384xf32>
    %c40 = arith.constant 40 : index
    %c0_8 = arith.constant 0 : index
    %12 = vector.load %arg8[%c40, %c0_8] : memref<72x384xf32, #tpu.memory_space<vmem>>, vector<8x384xf32>
    tpu.vector_store %arg8[%c40, %c0_8], %11 {strides = array<i32>} : memref<72x384xf32, #tpu.memory_space<vmem>>, vector<8x384xf32>,
    %c348_i32 = arith.constant 348 : i32
    %13 = tpu.dynamic_rotate %1 by %c348_i32 dim 1 : vector<8x384xf32>, i32 -> vector<8x384xf32>
    %c48 = arith.constant 48 : index
    %c0_9 = arith.constant 0 : index
    %14 = vector.load %arg8[%c48, %c0_9] : memref<72x384xf32, #tpu.memory_space<vmem>>, vector<8x384xf32>
    tpu.vector_store %arg8[%c48, %c0_9], %13 {strides = array<i32>} : memref<72x384xf32, #tpu.memory_space<vmem>>, vector<8x384xf32>,
    %c347_i32 = arith.constant 347 : i32
    %15 = tpu.dynamic_rotate %1 by %c347_i32 dim 1 : vector<8x384xf32>, i32 -> vector<8x384xf32>
    %c56 = arith.constant 56 : index
    %c0_10 = arith.constant 0 : index
    %16 = vector.load %arg8[%c56, %c0_10] : memref<72x384xf32, #tpu.memory_space<vmem>>, vector<8x384xf32>
    tpu.vector_store %arg8[%c56, %c0_10], %15 {strides = array<i32>} : memref<72x384xf32, #tpu.memory_space<vmem>>, vector<8x384xf32>,
    %c346_i32 = arith.constant 346 : i32
    %17 = tpu.dynamic_rotate %1 by %c346_i32 dim 1 : vector<8x384xf32>, i32 -> vector<8x384xf32>
    %c64 = arith.constant 64 : index
    %c0_11 = arith.constant 0 : index
    %18 = vector.load %arg8[%c64, %c0_11] : memref<72x384xf32, #tpu.memory_space<vmem>>, vector<8x384xf32>
    tpu.vector_store %arg8[%c64, %c0_11], %17 {strides = array<i32>} : memref<72x384xf32, #tpu.memory_space<vmem>>, vector<8x384xf32>,
    %c0_12 = arith.constant 0 : index
    %c0_13 = arith.constant 0 : index
    %19 = vector.load %arg2[%c0_12, %c0_13] : memref<8x72xf32, #tpu.memory_space<vmem>>, vector<8x72xf32>
    %c0_14 = arith.constant 0 : index
    %c0_15 = arith.constant 0 : index
    %20 = vector.load %arg8[%c0_14, %c0_15] : memref<72x384xf32, #tpu.memory_space<vmem>>, vector<72x384xf32>
    %cst = arith.constant dense<0.000000e+00> : vector<8x384xf32>
    %21 = tpu.matmul %19, %20, %cst {dimension_numbers = #tpu.dot_dimension_numbers<[1], [0], [0], [1], [0, 0, 1, 1], [], []>} : vector<8x72xf32>, vector<72x384xf32>, vector<8x384xf32> -> vector<8x384xf32>
    %c0_16 = arith.constant 0 : index
    %c0_17 = arith.constant 0 : index
    %22 = vector.load %arg3[%c0_16, %c0_17] : memref<8x1xf32, #tpu.memory_space<vmem>>, vector<8x1xf32>
    %23 = vector.broadcast %22 : vector<8x1xf32> to vector<8x384xf32>
    %24 = arith.addf %21, %23 : vector<8x384xf32>
    %c0_18 = arith.constant 0 : index
    %c0_19 = arith.constant 0 : index
    %25 = vector.load %arg6[%c0_18, %c0_19] : memref<1x384xf32, #tpu.memory_space<vmem>>, vector<1x384xf32>
    %26 = vector.broadcast %25 : vector<1x384xf32> to vector<8x384xf32>
    %27 = arith.mulf %24, %26 : vector<8x384xf32>
    %cst_20 = arith.constant dense<0.000000e+00> : vector<8xf32>
    %28 = vector.multi_reduction <add>, %27, %cst_20 [1] : vector<8x384xf32> to vector<8xf32>
    %29 = vector.shape_cast %28 : vector<8xf32> to vector<8x1xf32>
    %30 = vector.shape_cast %29 : vector<8x1xf32> to vector<1x8x1xf32>
    %cst_21 = arith.constant dense<0.000000e+00> : vector<1xf32>
    %31 = vector.multi_reduction <add>, %30, %cst_21 [1, 2] : vector<1x8x1xf32> to vector<1xf32>
    %32 = vector.shape_cast %31 : vector<1xf32> to vector<1x1x1xf32>
    %33 = vector.extract %32[0, 0, 0] : f32 from vector<1x1x1xf32>
    %cst_22 = arith.constant 4.8828125E-4 : f32
    %34 = arith.mulf %33, %cst_22 : f32
    %35 = vector.broadcast %34 : f32 to vector<8x384xf32>
    %36 = arith.subf %24, %35 : vector<8x384xf32>
    %37 = vector.broadcast %25 : vector<1x384xf32> to vector<8x384xf32>
    %38 = arith.mulf %36, %37 : vector<8x384xf32>
    %39 = arith.mulf %38, %38 : vector<8x384xf32>
    %cst_23 = arith.constant dense<0.000000e+00> : vector<8xf32>
    %40 = vector.multi_reduction <add>, %39, %cst_23 [1] : vector<8x384xf32> to vector<8xf32>
    %41 = vector.shape_cast %40 : vector<8xf32> to vector<8x1xf32>
    %42 = vector.shape_cast %41 : vector<8x1xf32> to vector<1x8x1xf32>
    %cst_24 = arith.constant dense<0.000000e+00> : vector<1xf32>
    %43 = vector.multi_reduction <add>, %42, %cst_24 [1, 2] : vector<1x8x1xf32> to vector<1xf32>
    %44 = vector.shape_cast %43 : vector<1xf32> to vector<1x1x1xf32>
    %45 = vector.extract %44[0, 0, 0] : f32 from vector<1x1x1xf32>
    %cst_25 = arith.constant 4.8828125E-4 : f32
    %46 = arith.mulf %45, %cst_25 : f32
    %cst_26 = arith.constant 9.99999974E-6 : f32
    %47 = arith.addf %46, %cst_26 : f32
    %48 = math.rsqrt %47 : f32
    %c0_27 = arith.constant 0 : index
    %c0_28 = arith.constant 0 : index
    %49 = vector.load %arg4[%c0_27, %c0_28] : memref<8x1xf32, #tpu.memory_space<vmem>>, vector<8x1xf32>
    %50 = vector.broadcast %48 : f32 to vector<8x1xf32>
    %51 = arith.mulf %49, %50 : vector<8x1xf32>
    %c0_29 = arith.constant 0 : index
    %c0_30 = arith.constant 0 : index
    %52 = vector.load %arg5[%c0_29, %c0_30] : memref<8x1xf32, #tpu.memory_space<vmem>>, vector<8x1xf32>
    %53 = vector.broadcast %34 : f32 to vector<8x1xf32>
    %54 = arith.mulf %53, %51 : vector<8x1xf32>
    %55 = arith.subf %52, %54 : vector<8x1xf32>
    %56 = vector.broadcast %51 : vector<8x1xf32> to vector<8x384xf32>
    %57 = arith.mulf %24, %56 : vector<8x384xf32>
    %58 = vector.broadcast %55 : vector<8x1xf32> to vector<8x384xf32>
    %59 = arith.addf %57, %58 : vector<8x384xf32>
    %cst_31 = arith.constant 2.000000e-02 : f32
    %60 = vector.broadcast %cst_31 : f32 to vector<8x384xf32>
    %61 = arith.mulf %60, %59 : vector<8x384xf32>
    %62 = arith.maximumf %59, %61 : vector<8x384xf32>
    %c0_32 = arith.constant 0 : index
    %c0_33 = arith.constant 0 : index
    %c0_34 = arith.constant 0 : index
    %63 = vector.load %arg7[%c0_32, %c0_33, %c0_34] : memref<1x8x384xf32, #tpu.memory_space<vmem>>, vector<1x8x384xf32>
    %64 = vector.shape_cast %63 : vector<1x8x384xf32> to vector<8x384xf32>
    %65 = vector.shape_cast %62 : vector<8x384xf32> to vector<1x8x384xf32>
    tpu.vector_store %arg7[%c0_32, %c0_33, %c0_34], %65 {strides = array<i32>} : memref<1x8x384xf32, #tpu.memory_space<vmem>>, vector<1x8x384xf32>,
    return
  }
  func.func @transform_0(%arg0: i32) -> (i32, i32, i32) {
    %c0_i32 = arith.constant 0 : i32
    %c0_i32_0 = arith.constant 0 : i32
    %c0_i32_1 = arith.constant 0 : i32
    return %arg0, %c0_i32, %c0_i32_0 : i32, i32, i32
  }
  func.func @transform_1(%arg0: i32) -> (i32, i32) {
    %c0_i32 = arith.constant 0 : i32
    %c0_i32_0 = arith.constant 0 : i32
    %c0_i32_1 = arith.constant 0 : i32
    return %c0_i32, %c0_i32_0 : i32, i32
  }
  func.func @transform_2(%arg0: i32) -> (i32, i32) {
    %c0_i32 = arith.constant 0 : i32
    %c0_i32_0 = arith.constant 0 : i32
    %c0_i32_1 = arith.constant 0 : i32
    return %c0_i32, %c0_i32_0 : i32, i32
  }
  func.func @transform_3(%arg0: i32) -> (i32, i32) {
    %c0_i32 = arith.constant 0 : i32
    %c0_i32_0 = arith.constant 0 : i32
    %c0_i32_1 = arith.constant 0 : i32
    return %c0_i32, %c0_i32_0 : i32, i32
  }
  func.func @transform_4(%arg0: i32) -> (i32, i32) {
    %c0_i32 = arith.constant 0 : i32
    %c0_i32_0 = arith.constant 0 : i32
    %c0_i32_1 = arith.constant 0 : i32
    return %c0_i32, %c0_i32_0 : i32, i32
  }
  func.func @transform_5(%arg0: i32) -> (i32, i32) {
    %c0_i32 = arith.constant 0 : i32
    %c0_i32_0 = arith.constant 0 : i32
    %c0_i32_1 = arith.constant 0 : i32
    return %c0_i32, %c0_i32_0 : i32, i32
  }
  func.func @transform_6(%arg0: i32) -> (i32, i32, i32) {
    %c0_i32 = arith.constant 0 : i32
    %c0_i32_0 = arith.constant 0 : i32
    %c0_i32_1 = arith.constant 0 : i32
    return %arg0, %c0_i32, %c0_i32_0 : i32, i32, i32
  }
}

module attributes {stable_mosaic.version = 11 : i64} {
  func.func @kernel(%arg0: i32, %arg1: memref<1x8x384xf32, #tpu.memory_space<vmem>>, %arg2: memref<8x72xf32, #tpu.memory_space<vmem>>, %arg3: memref<8x1xf32, #tpu.memory_space<vmem>>, %arg4: memref<8x1xf32, #tpu.memory_space<vmem>>, %arg5: memref<8x1xf32, #tpu.memory_space<vmem>>, %arg6: memref<1x384xf32, #tpu.memory_space<vmem>>, %arg7: memref<1x8x384xf32, #tpu.memory_space<vmem>>, %arg8: memref<72x384xf32, #tpu.memory_space<vmem>>) attributes {dimension_semantics = [#tpu.dimension_semantics<parallel>], iteration_bounds = array<i64: 2>, scalar_prefetch = 0 : i64, scratch_operands = 1 : i64, tpu.core_type = #tpu.core_type<tc>, window_params = [{transform_indices = @transform_0, window_bounds = array<i64: 1, 8, 384>}, {pipeline_mode = #tpu.pipeline_mode<synchronous>, transform_indices = @transform_1, window_bounds = array<i64: 8, 72>}, {pipeline_mode = #tpu.pipeline_mode<synchronous>, transform_indices = @transform_2, window_bounds = array<i64: 8, 1>}, {pipeline_mode = #tpu.pipeline_mode<synchronous>, transform_indices = @transform_3, window_bounds = array<i64: 8, 1>}, {pipeline_mode = #tpu.pipeline_mode<synchronous>, transform_indices = @transform_4, window_bounds = array<i64: 8, 1>}, {pipeline_mode = #tpu.pipeline_mode<synchronous>, transform_indices = @transform_5, window_bounds = array<i64: 1, 384>}, {transform_indices = @transform_6, window_bounds = array<i64: 1, 8, 384>}]} {
    %c0 = arith.constant 0 : index
    %c0_0 = arith.constant 0 : index
    %c0_1 = arith.constant 0 : index
    %0 = vector.load %arg1[%c0, %c0_0, %c0_1] : memref<1x8x384xf32, #tpu.memory_space<vmem>>, vector<1x8x384xf32>
    %1 = vector.shape_cast %0 : vector<1x8x384xf32> to vector<8x384xf32>
    %c0_2 = arith.constant 0 : index
    %c0_3 = arith.constant 0 : index
    %2 = vector.load %arg8[%c0_2, %c0_3] : memref<72x384xf32, #tpu.memory_space<vmem>>, vector<8x384xf32>
    tpu.vector_store %arg8[%c0_2, %c0_3], %1 {strides = array<i32>} : memref<72x384xf32, #tpu.memory_space<vmem>>, vector<8x384xf32>,
    %c383_i32 = arith.constant 383 : i32
    %3 = tpu.dynamic_rotate %1 by %c383_i32 dim 1 : vector<8x384xf32>, i32 -> vector<8x384xf32>
    %c8 = arith.constant 8 : index
    %c0_4 = arith.constant 0 : index
    %4 = vector.load %arg8[%c8, %c0_4] : memref<72x384xf32, #tpu.memory_space<vmem>>, vector<8x384xf32>
    tpu.vector_store %arg8[%c8, %c0_4], %3 {strides = array<i32>} : memref<72x384xf32, #tpu.memory_space<vmem>>, vector<8x384xf32>,
    %c382_i32 = arith.constant 382 : i32
    %5 = tpu.dynamic_rotate %1 by %c382_i32 dim 1 : vector<8x384xf32>, i32 -> vector<8x384xf32>
    %c16 = arith.constant 16 : index
    %c0_5 = arith.constant 0 : index
    %6 = vector.load %arg8[%c16, %c0_5] : memref<72x384xf32, #tpu.memory_space<vmem>>, vector<8x384xf32>
    tpu.vector_store %arg8[%c16, %c0_5], %5 {strides = array<i32>} : memref<72x384xf32, #tpu.memory_space<vmem>>, vector<8x384xf32>,
    %c366_i32 = arith.constant 366 : i32
    %7 = tpu.dynamic_rotate %1 by %c366_i32 dim 1 : vector<8x384xf32>, i32 -> vector<8x384xf32>
    %c24 = arith.constant 24 : index
    %c0_6 = arith.constant 0 : index
    %8 = vector.load %arg8[%c24, %c0_6] : memref<72x384xf32, #tpu.memory_space<vmem>>, vector<8x384xf32>
    tpu.vector_store %arg8[%c24, %c0_6], %7 {strides = array<i32>} : memref<72x384xf32, #tpu.memory_space<vmem>>, vector<8x384xf32>,
    %c365_i32 = arith.constant 365 : i32
    %9 = tpu.dynamic_rotate %1 by %c365_i32 dim 1 : vector<8x384xf32>, i32 -> vector<8x384xf32>
    %c32 = arith.constant 32 : index
    %c0_7 = arith.constant 0 : index
    %10 = vector.load %arg8[%c32, %c0_7] : memref<72x384xf32, #tpu.memory_space<vmem>>, vector<8x384xf32>
    tpu.vector_store %arg8[%c32, %c0_7], %9 {strides = array<i32>} : memref<72x384xf32, #tpu.memory_space<vmem>>, vector<8x384xf32>,
    %c364_i32 = arith.constant 364 : i32
    %11 = tpu.dynamic_rotate %1 by %c364_i32 dim 1 : vector<8x384xf32>, i32 -> vector<8x384xf32>
    %c40 = arith.constant 40 : index
    %c0_8 = arith.constant 0 : index
    %12 = vector.load %arg8[%c40, %c0_8] : memref<72x384xf32, #tpu.memory_space<vmem>>, vector<8x384xf32>
    tpu.vector_store %arg8[%c40, %c0_8], %11 {strides = array<i32>} : memref<72x384xf32, #tpu.memory_space<vmem>>, vector<8x384xf32>,
    %c348_i32 = arith.constant 348 : i32
    %13 = tpu.dynamic_rotate %1 by %c348_i32 dim 1 : vector<8x384xf32>, i32 -> vector<8x384xf32>
    %c48 = arith.constant 48 : index
    %c0_9 = arith.constant 0 : index
    %14 = vector.load %arg8[%c48, %c0_9] : memref<72x384xf32, #tpu.memory_space<vmem>>, vector<8x384xf32>
    tpu.vector_store %arg8[%c48, %c0_9], %13 {strides = array<i32>} : memref<72x384xf32, #tpu.memory_space<vmem>>, vector<8x384xf32>,
    %c347_i32 = arith.constant 347 : i32
    %15 = tpu.dynamic_rotate %1 by %c347_i32 dim 1 : vector<8x384xf32>, i32 -> vector<8x384xf32>
    %c56 = arith.constant 56 : index
    %c0_10 = arith.constant 0 : index
    %16 = vector.load %arg8[%c56, %c0_10] : memref<72x384xf32, #tpu.memory_space<vmem>>, vector<8x384xf32>
    tpu.vector_store %arg8[%c56, %c0_10], %15 {strides = array<i32>} : memref<72x384xf32, #tpu.memory_space<vmem>>, vector<8x384xf32>,
    %c346_i32 = arith.constant 346 : i32
    %17 = tpu.dynamic_rotate %1 by %c346_i32 dim 1 : vector<8x384xf32>, i32 -> vector<8x384xf32>
    %c64 = arith.constant 64 : index
    %c0_11 = arith.constant 0 : index
    %18 = vector.load %arg8[%c64, %c0_11] : memref<72x384xf32, #tpu.memory_space<vmem>>, vector<8x384xf32>
    tpu.vector_store %arg8[%c64, %c0_11], %17 {strides = array<i32>} : memref<72x384xf32, #tpu.memory_space<vmem>>, vector<8x384xf32>,
    %c0_12 = arith.constant 0 : index
    %c0_13 = arith.constant 0 : index
    %19 = vector.load %arg2[%c0_12, %c0_13] : memref<8x72xf32, #tpu.memory_space<vmem>>, vector<8x72xf32>
    %c0_14 = arith.constant 0 : index
    %c0_15 = arith.constant 0 : index
    %20 = vector.load %arg8[%c0_14, %c0_15] : memref<72x384xf32, #tpu.memory_space<vmem>>, vector<72x384xf32>
    %cst = arith.constant dense<0.000000e+00> : vector<8x384xf32>
    %21 = tpu.matmul %19, %20, %cst {dimension_numbers = #tpu.dot_dimension_numbers<[1], [0], [0], [1], [0, 0, 1, 1], [], []>} : vector<8x72xf32>, vector<72x384xf32>, vector<8x384xf32> -> vector<8x384xf32>
    %c0_16 = arith.constant 0 : index
    %c0_17 = arith.constant 0 : index
    %22 = vector.load %arg3[%c0_16, %c0_17] : memref<8x1xf32, #tpu.memory_space<vmem>>, vector<8x1xf32>
    %23 = vector.broadcast %22 : vector<8x1xf32> to vector<8x384xf32>
    %24 = arith.addf %21, %23 : vector<8x384xf32>
    %c0_18 = arith.constant 0 : index
    %c0_19 = arith.constant 0 : index
    %25 = vector.load %arg6[%c0_18, %c0_19] : memref<1x384xf32, #tpu.memory_space<vmem>>, vector<1x384xf32>
    %26 = vector.broadcast %25 : vector<1x384xf32> to vector<8x384xf32>
    %27 = arith.mulf %24, %26 : vector<8x384xf32>
    %cst_20 = arith.constant dense<0.000000e+00> : vector<8xf32>
    %28 = vector.multi_reduction <add>, %27, %cst_20 [1] : vector<8x384xf32> to vector<8xf32>
    %29 = vector.shape_cast %28 : vector<8xf32> to vector<8x1xf32>
    %30 = vector.shape_cast %29 : vector<8x1xf32> to vector<1x8x1xf32>
    %cst_21 = arith.constant dense<0.000000e+00> : vector<1xf32>
    %31 = vector.multi_reduction <add>, %30, %cst_21 [1, 2] : vector<1x8x1xf32> to vector<1xf32>
    %32 = vector.shape_cast %31 : vector<1xf32> to vector<1x1x1xf32>
    %33 = vector.extract %32[0, 0, 0] : f32 from vector<1x1x1xf32>
    %cst_22 = arith.constant 4.8828125E-4 : f32
    %34 = arith.mulf %33, %cst_22 : f32
    %35 = vector.broadcast %34 : f32 to vector<8x384xf32>
    %36 = arith.subf %24, %35 : vector<8x384xf32>
    %37 = vector.broadcast %25 : vector<1x384xf32> to vector<8x384xf32>
    %38 = arith.mulf %36, %37 : vector<8x384xf32>
    %39 = arith.mulf %38, %38 : vector<8x384xf32>
    %cst_23 = arith.constant dense<0.000000e+00> : vector<8xf32>
    %40 = vector.multi_reduction <add>, %39, %cst_23 [1] : vector<8x384xf32> to vector<8xf32>
    %41 = vector.shape_cast %40 : vector<8xf32> to vector<8x1xf32>
    %42 = vector.shape_cast %41 : vector<8x1xf32> to vector<1x8x1xf32>
    %cst_24 = arith.constant dense<0.000000e+00> : vector<1xf32>
    %43 = vector.multi_reduction <add>, %42, %cst_24 [1, 2] : vector<1x8x1xf32> to vector<1xf32>
    %44 = vector.shape_cast %43 : vector<1xf32> to vector<1x1x1xf32>
    %45 = vector.extract %44[0, 0, 0] : f32 from vector<1x1x1xf32>
    %cst_25 = arith.constant 4.8828125E-4 : f32
    %46 = arith.mulf %45, %cst_25 : f32
    %cst_26 = arith.constant 9.99999974E-6 : f32
    %47 = arith.addf %46, %cst_26 : f32
    %48 = math.rsqrt %47 : f32
    %c0_27 = arith.constant 0 : index
    %c0_28 = arith.constant 0 : index
    %49 = vector.load %arg4[%c0_27, %c0_28] : memref<8x1xf32, #tpu.memory_space<vmem>>, vector<8x1xf32>
    %50 = vector.broadcast %48 : f32 to vector<8x1xf32>
    %51 = arith.mulf %49, %50 : vector<8x1xf32>
    %c0_29 = arith.constant 0 : index
    %c0_30 = arith.constant 0 : index
    %52 = vector.load %arg5[%c0_29, %c0_30] : memref<8x1xf32, #tpu.memory_space<vmem>>, vector<8x1xf32>
    %53 = vector.broadcast %34 : f32 to vector<8x1xf32>
    %54 = arith.mulf %53, %51 : vector<8x1xf32>
    %55 = arith.subf %52, %54 : vector<8x1xf32>
    %56 = vector.broadcast %51 : vector<8x1xf32> to vector<8x384xf32>
    %57 = arith.mulf %24, %56 : vector<8x384xf32>
    %58 = vector.broadcast %55 : vector<8x1xf32> to vector<8x384xf32>
    %59 = arith.addf %57, %58 : vector<8x384xf32>
    %cst_31 = arith.constant 2.000000e-02 : f32
    %60 = vector.broadcast %cst_31 : f32 to vector<8x384xf32>
    %61 = arith.mulf %60, %59 : vector<8x384xf32>
    %62 = arith.maximumf %59, %61 : vector<8x384xf32>
    %c0_32 = arith.constant 0 : index
    %c0_33 = arith.constant 0 : index
    %c0_34 = arith.constant 0 : index
    %63 = vector.load %arg7[%c0_32, %c0_33, %c0_34] : memref<1x8x384xf32, #tpu.memory_space<vmem>>, vector<1x8x384xf32>
    %64 = vector.shape_cast %63 : vector<1x8x384xf32> to vector<8x384xf32>
    %65 = vector.shape_cast %62 : vector<8x384xf32> to vector<1x8x384xf32>
    tpu.vector_store %arg7[%c0_32, %c0_33, %c0_34], %65 {strides = array<i32>} : memref<1x8x384xf32, #tpu.memory_space<vmem>>, vector<1x8x384xf32>,
    return
  }
  func.func @transform_0(%arg0: i32) -> (i32, i32, i32) {
    %c0_i32 = arith.constant 0 : i32
    %c0_i32_0 = arith.constant 0 : i32
    %c0_i32_1 = arith.constant 0 : i32
    return %arg0, %c0_i32, %c0_i32_0 : i32, i32, i32
  }
  func.func @transform_1(%arg0: i32) -> (i32, i32) {
    %c0_i32 = arith.constant 0 : i32
    %c0_i32_0 = arith.constant 0 : i32
    %c0_i32_1 = arith.constant 0 : i32
    return %c0_i32, %c0_i32_0 : i32, i32
  }
  func.func @transform_2(%arg0: i32) -> (i32, i32) {
    %c0_i32 = arith.constant 0 : i32
    %c0_i32_0 = arith.constant 0 : i32
    %c0_i32_1 = arith.constant 0 : i32
    return %c0_i32, %c0_i32_0 : i32, i32
  }
  func.func @transform_3(%arg0: i32) -> (i32, i32) {
    %c0_i32 = arith.constant 0 : i32
    %c0_i32_0 = arith.constant 0 : i32
    %c0_i32_1 = arith.constant 0 : i32
    return %c0_i32, %c0_i32_0 : i32, i32
  }
  func.func @transform_4(%arg0: i32) -> (i32, i32) {
    %c0_i32 = arith.constant 0 : i32
    %c0_i32_0 = arith.constant 0 : i32
    %c0_i32_1 = arith.constant 0 : i32
    return %c0_i32, %c0_i32_0 : i32, i32
  }
  func.func @transform_5(%arg0: i32) -> (i32, i32) {
    %c0_i32 = arith.constant 0 : i32
    %c0_i32_0 = arith.constant 0 : i32
    %c0_i32_1 = arith.constant 0 : i32
    return %c0_i32, %c0_i32_0 : i32, i32
  }
  func.func @transform_6(%arg0: i32) -> (i32, i32, i32) {
    %c0_i32 = arith.constant 0 : i32
    %c0_i32_0 = arith.constant 0 : i32
    %c0_i32_1 = arith.constant 0 : i32
    return %arg0, %c0_i32, %c0_i32_0 : i32, i32, i32
  }
}

</mosaic_0001>

<llo_original>
// kernel: tpu_custom_call.1
$region0: #{tpu_custom_call.1}
  #allocation0 [shape = 'u32[]', space=smem, size = 0x4, offset = 0x4, fixed_abs, tag = 'smem constant byte address 0x4 - core index']
  #allocation1 [shape = 'u32[144,128]{1,0:T(1,128)}', space=vmem, size = 0x12000, scoped, tag = 'internal scratch']
  #allocation2 [shape = 'f32[72,384]{1,0:T(8,128)}', space=vmem, size = 0x1b000, scoped, tag = 'scratch operand']
  %s0 = inlined_call_operand.hbm [shape: f32[2,8,384], index: 0, kind: input, shape index: {}]
  %s1 = inlined_call_operand.vmem [shape: f32[8,72], index: 1, kind: input, shape index: {}]
  %s2 = inlined_call_operand.vmem [shape: f32[8,1], index: 2, kind: input, shape index: {}]
  %s3 = inlined_call_operand.vmem [shape: f32[8,1], index: 3, kind: input, shape index: {}]
  %s4 = inlined_call_operand.vmem [shape: f32[8,1], index: 4, kind: input, shape index: {}]
  %s5 = inlined_call_operand.vmem [shape: f32[1,384], index: 5, kind: input, shape index: {}]
  %s6 = inlined_call_operand.hbm [shape: f32[2,8,384], index: 6, kind: output, shape index: {}]
  %s7 = sld [smem:[#allocation0]]
  $region61: #{tpu_custom_call.1} parent=0
    _
  %s9 = ssub.s32 1, %s7
  %s10 = scalar_select 0, %s9, %s7
  $region1: #{tpu_custom_call.1} parent=0
    #allocation3 [shape = 'u8[24576]{0}', space=vmem, size = 0x6000, scoped, tag = 'input window, operand 0']
    #allocation4 [shape = 's32[2]{0}', space=sflag, size = 0x8, scoped, tag = 'scoped memory for tpu_custom_call.1']
    #allocation5 [shape = 's32[2]{0}', space=sflag, size = 0x8, scoped, tag = 'scoped memory for tpu_custom_call.1']
    #allocation6 [shape = 'u8[24576]{0}', space=vmem, size = 0x6000, scoped, tag = 'output window, operand 0']
    %11 = vsyncpa [#allocation4], 0
    %s12 = scalar_lea.sflag [#allocation4], 1
    %13 = vsyncpa %s12, 0
    %14 = vsyncpa [#allocation5], 0
    %s15 = scalar_lea.sflag [#allocation5], 1
    %16 = vsyncpa %s15, 0
    loop: start=0, step=1, limit=4
    $region2: #{tpu_custom_call.1} parent=1 // loop_pre_header
      _
    $region3: #{tpu_custom_call.1} parent=1 // loop_header
      %s18 = sphi 0, %s22
      %p19 = scmp.ge.s32.totalorder %s18, 4
      %s28 = sphi 0, %s30
      %s31 = sphi 0, %s28
      %s32 = sphi 0, %s31
      %s48 = sphi 0, %s32
      %s52 = sphi 0, %s52
      %s54 = sphi 0, %s52
      %s55 = sphi 0, %s54
      %s69 = sphi 0, %s55
      %s73 = sphi 0, %s73
      %s75 = sphi 0, %s73
      %s76 = sphi 0, %s75
      %s90 = sphi 0, %s76
      %s94 = sphi 0, %s94
      %s96 = sphi 0, %s94
      %s97 = sphi 0, %s96
      %s111 = sphi 0, %s97
      %s115 = sphi 0, %s115
      %s117 = sphi 0, %s115
      %s118 = sphi 0, %s117
      %s132 = sphi 0, %s118
      %s136 = sphi 0, %s136
      %s138 = sphi 0, %s136
      %s139 = sphi 0, %s138
      %s153 = sphi 0, %s139
      %s159 = sphi 0, %s161
      %s162 = sphi 0, %s159
      %s163 = sphi 0, %s162
      %s179 = sphi 0, %s163
    $region4: #{tpu_custom_call.1} parent=1 // loop_header_branch
      %21 = sbr.rel (%p19) target = $region8
    $region5: #{tpu_custom_call.1} parent=1 // loop_body
      %s23 = ssub.s32 %s18, 1
      %s24 = ssub.s32 %s18, 2
      %s25 = sadd.s32 %s18, 1
      %s26 = ssub.s32 %s18, %s25
      %p27 = scmp.eq.s32.totalorder %s26, 0
      %s29 = sadd.s32 %s28, 1
      %s30 = scalar_select %p27, %s28, %s29
      %p33 = pneg %p27
      %p34 = scmp.eq.s32.totalorder %s18, 1
      %p35 = por %p33, %p34
      %p36 = scmp.ne.s32.totalorder %s28, %s31
      %p37 = scmp.eq.s32.totalorder %s18, 0
      %p38 = por %p36, %p37
      %p39 = scmp.ne.s32.totalorder %s28, %s31
      %p40 = scmp.eq.s32.totalorder %s23, 1
      %p41 = por %p39, %p40
      %p42 = scmp.ne.s32.totalorder %s31, %s32
      %p43 = scmp.eq.s32.totalorder %s23, 0
      %p44 = por %p42, %p43
      %p45 = scmp.ne.s32.totalorder %s31, %s32
      %p46 = scmp.eq.s32.totalorder %s24, 1
      %p47 = por %p45, %p46
      %p49 = scmp.ne.s32.totalorder %s32, %s48
      %p50 = scmp.eq.s32.totalorder %s24, 0
      %p51 = por %p49, %p50
      %s53 = sadd.s32 %s52, 1
      %p56 = scmp.eq.s32.totalorder %s18, 1
      %p57 = scmp.ne.s32.totalorder %s52, %s54
      %p58 = scmp.eq.s32.totalorder %s18, 0
      %p59 = por %p57, %p58
      %p60 = scmp.ne.s32.totalorder %s52, %s54
      %p61 = scmp.eq.s32.totalorder %s23, 1
      %p62 = por %p60, %p61
      %p63 = scmp.ne.s32.totalorder %s54, %s55
      %p64 = scmp.eq.s32.totalorder %s23, 0
      %p65 = por %p63, %p64
      %p66 = scmp.ne.s32.totalorder %s54, %s55
      %p67 = scmp.eq.s32.totalorder %s24, 1
      %p68 = por %p66, %p67
      %p70 = scmp.ne.s32.totalorder %s55, %s69
      %p71 = scmp.eq.s32.totalorder %s24, 0
      %p72 = por %p70, %p71
      %s74 = sadd.s32 %s73, 1
      %p77 = scmp.eq.s32.totalorder %s18, 1
      %p78 = scmp.ne.s32.totalorder %s73, %s75
      %p79 = scmp.eq.s32.totalorder %s18, 0
      %p80 = por %p78, %p79
      %p81 = scmp.ne.s32.totalorder %s73, %s75
      %p82 = scmp.eq.s32.totalorder %s23, 1
      %p83 = por %p81, %p82
      %p84 = scmp.ne.s32.totalorder %s75, %s76
      %p85 = scmp.eq.s32.totalorder %s23, 0
      %p86 = por %p84, %p85
      %p87 = scmp.ne.s32.totalorder %s75, %s76
      %p88 = scmp.eq.s32.totalorder %s24, 1
      %p89 = por %p87, %p88
      %p91 = scmp.ne.s32.totalorder %s76, %s90
      %p92 = scmp.eq.s32.totalorder %s24, 0
      %p93 = por %p91, %p92
      %s95 = sadd.s32 %s94, 1
      %p98 = scmp.eq.s32.totalorder %s18, 1
      %p99 = scmp.ne.s32.totalorder %s94, %s96
      %p100 = scmp.eq.s32.totalorder %s18, 0
      %p101 = por %p99, %p100
      %p102 = scmp.ne.s32.totalorder %s94, %s96
      %p103 = scmp.eq.s32.totalorder %s23, 1
      %p104 = por %p102, %p103
      %p105 = scmp.ne.s32.totalorder %s96, %s97
      %p106 = scmp.eq.s32.totalorder %s23, 0
      %p107 = por %p105, %p106
      %p108 = scmp.ne.s32.totalorder %s96, %s97
      %p109 = scmp.eq.s32.totalorder %s24, 1
      %p110 = por %p108, %p109
      %p112 = scmp.ne.s32.totalorder %s97, %s111
      %p113 = scmp.eq.s32.totalorder %s24, 0
      %p114 = por %p112, %p113
      %s116 = sadd.s32 %s115, 1
      %p119 = scmp.eq.s32.totalorder %s18, 1
      %p120 = scmp.ne.s32.totalorder %s115, %s117
      %p121 = scmp.eq.s32.totalorder %s18, 0
      %p122 = por %p120, %p121
      %p123 = scmp.ne.s32.totalorder %s115, %s117
      %p124 = scmp.eq.s32.totalorder %s23, 1
      %p125 = por %p123, %p124
      %p126 = scmp.ne.s32.totalorder %s117, %s118
      %p127 = scmp.eq.s32.totalorder %s23, 0
      %p128 = por %p126, %p127
      %p129 = scmp.ne.s32.totalorder %s117, %s118
      %p130 = scmp.eq.s32.totalorder %s24, 1
      %p131 = por %p129, %p130
      %p133 = scmp.ne.s32.totalorder %s118, %s132
      %p134 = scmp.eq.s32.totalorder %s24, 0
      %p135 = por %p133, %p134
      %s137 = sadd.s32 %s136, 1
      %p140 = scmp.eq.s32.totalorder %s18, 1
      %p141 = scmp.ne.s32.totalorder %s136, %s138
      %p142 = scmp.eq.s32.totalorder %s18, 0
      %p143 = por %p141, %p142
      %p144 = scmp.ne.s32.totalorder %s136, %s138
      %p145 = scmp.eq.s32.totalorder %s23, 1
      %p146 = por %p144, %p145
      %p147 = scmp.ne.s32.totalorder %s138, %s139
      %p148 = scmp.eq.s32.totalorder %s23, 0
      %p149 = por %p147, %p148
      %p150 = scmp.ne.s32.totalorder %s138, %s139
      %p151 = scmp.eq.s32.totalorder %s24, 1
      %p152 = por %p150, %p151
      %p154 = scmp.ne.s32.totalorder %s139, %s153
      %p155 = scmp.eq.s32.totalorder %s24, 0
      %p156 = por %p154, %p155
      %s157 = ssub.s32 %s18, %s25
      %p158 = scmp.eq.s32.totalorder %s157, 0
      %s160 = sadd.s32 %s159, 1
      %s161 = scalar_select %p158, %s159, %s160
      %p164 = pneg %p158
      %p165 = scmp.eq.s32.totalorder %s18, 1
      %p166 = por %p164, %p165
      %p167 = scmp.ne.s32.totalorder %s159, %s162
      %p168 = scmp.eq.s32.totalorder %s18, 0
      %p169 = por %p167, %p168
      %p170 = scmp.ne.s32.totalorder %s159, %s162
      %p171 = scmp.eq.s32.totalorder %s23, 1
      %p172 = por %p170, %p171
      %p173 = scmp.ne.s32.totalorder %s162, %s163
      %p174 = scmp.eq.s32.totalorder %s23, 0
      %p175 = por %p173, %p174
      %p176 = scmp.ne.s32.totalorder %s162, %s163
      %p177 = scmp.eq.s32.totalorder %s24, 1
      %p178 = por %p176, %p177
      %p180 = scmp.ne.s32.totalorder %s163, %s179
      %p181 = scmp.eq.s32.totalorder %s24, 0
      %p182 = por %p180, %p181
      %p183 = scmp.le.s32.totalorder 1, %s18
      %p184 = scmp.lt.s32.totalorder %s18, 3
      %p185 = pnand %p183, %p184
      %p186 = pneg %p185
      // Predicated region
      $region9: #{tpu_custom_call.1} parent=5 // pred_check
        _
      $region10: #{tpu_custom_call.1} parent=5 // pred_check_branch
        %188 = sbr.rel (%p185) target = $region12
      $region11: #{tpu_custom_call.1} parent=5 // pred_region
        %s189 = ssub.s32 %s18, 1
        // Predicated region
        $region13: #{tpu_custom_call.1} parent=11 // pred_check
          %p190 = pneg %p65
        $region14: #{tpu_custom_call.1} parent=11 // pred_check_branch
          %192 = sbr.rel (%p190) target = $region16
        $region15: #{tpu_custom_call.1} parent=11 // pred_region
          _
        $region16: #{tpu_custom_call.1} parent=11 // pred_fallthru
          _
        // Predicated region
        $region17: #{tpu_custom_call.1} parent=11 // pred_check
          %p193 = pneg %p86
        $region18: #{tpu_custom_call.1} parent=11 // pred_check_branch
          %195 = sbr.rel (%p193) target = $region20
        $region19: #{tpu_custom_call.1} parent=11 // pred_region
          _
        $region20: #{tpu_custom_call.1} parent=11 // pred_fallthru
          _
        // Predicated region
        $region21: #{tpu_custom_call.1} parent=11 // pred_check
          %p196 = pneg %p107
        $region22: #{tpu_custom_call.1} parent=11 // pred_check_branch
          %198 = sbr.rel (%p196) target = $region24
        $region23: #{tpu_custom_call.1} parent=11 // pred_region
          _
        $region24: #{tpu_custom_call.1} parent=11 // pred_fallthru
          _
        // Predicated region
        $region25: #{tpu_custom_call.1} parent=11 // pred_check
          %p199 = pneg %p128
        $region26: #{tpu_custom_call.1} parent=11 // pred_check_branch
          %201 = sbr.rel (%p199) target = $region28
        $region27: #{tpu_custom_call.1} parent=11 // pred_region
          _
        $region28: #{tpu_custom_call.1} parent=11 // pred_fallthru
          _
        // Predicated region
        $region29: #{tpu_custom_call.1} parent=11 // pred_check
          %p202 = pneg %p149
        $region30: #{tpu_custom_call.1} parent=11 // pred_check_branch
          %204 = sbr.rel (%p202) target = $region32
        $region31: #{tpu_custom_call.1} parent=11 // pred_region
          _
        $region32: #{tpu_custom_call.1} parent=11 // pred_fallthru
          _
      $region12: #{tpu_custom_call.1} parent=5 // pred_fallthru
        _
      %p205 = scmp.lt.s32.totalorder %s18, 2
      // Predicated region
      $region33: #{tpu_custom_call.1} parent=5 // pred_check
        %p206 = pneg %p205
      $region34: #{tpu_custom_call.1} parent=5 // pred_check_branch
        %208 = sbr.rel (%p206) target = $region36
      $region35: #{tpu_custom_call.1} parent=5 // pred_region
        // Predicated region
        $region37: #{tpu_custom_call.1} parent=35 // pred_check
          %p209 = pneg %p38
        $region38: #{tpu_custom_call.1} parent=35 // pred_check_branch
          %211 = sbr.rel (%p209) target = $region40
        $region39: #{tpu_custom_call.1} parent=35 // pred_region
          %s212 = sand.u32 %s28, 1
          %s213 = scalar_lea.sflag [#allocation4], %s212
          %s214 = sand.u32 %s28, 1
          %s215 = smul.addr %s214, 24
          %s216 = scalar_lea.vmem [#allocation3], %s215
          %s218 = ssub.s32 384, 384
          %219 = vsyncadd %s213, %s218
          %s220 = smul.addr %s18, 3
          %s221 = smul.addr %s220, 128
          %s222 = scalar_lea.hbm %s0, %s221
          %s224 = sshll.u32 %s216, 4
          %s225 = int_to_ptr.vmem [resolvable:$true] %s224
          %227 = dma.hbm_to_vmem [thread:$0]  %s222, 384, %s225, %s213
        $region40: #{tpu_custom_call.1} parent=35 // pred_fallthru
          _
      $region36: #{tpu_custom_call.1} parent=5 // pred_fallthru
        _
      %p228 = scmp.le.s32.totalorder 1, %s18
      %p229 = scmp.lt.s32.totalorder %s18, 3
      %p230 = pnand %p228, %p229
      %p231 = pneg %p230
      // Predicated region
      $region41: #{tpu_custom_call.1} parent=5 // pred_check
        _
      $region42: #{tpu_custom_call.1} parent=5 // pred_check_branch
        %233 = sbr.rel (%p230) target = $region44
      $region43: #{tpu_custom_call.1} parent=5 // pred_region
        %s234 = ssub.s32 %s18, 1
        %s235 = sand.u32 %s31, 1
        %s236 = scalar_lea.sflag [#allocation4], %s235
        %s237 = sand.u32 %s31, 1
        %s238 = smul.addr %s237, 24
        %s239 = scalar_lea.vmem [#allocation3], %s238
        // Predicated region
        $region45: #{tpu_custom_call.1} parent=43 // pred_check
          %p240 = pneg %p44
        $region46: #{tpu_custom_call.1} parent=43 // pred_check_branch
          %242 = sbr.rel (%p240) target = $region48
        $region47: #{tpu_custom_call.1} parent=43 // pred_region
          %243 = dma.done %s236, 384
        $region48: #{tpu_custom_call.1} parent=43 // pred_fallthru
          _
        %s244 = sand.u32 %s31, 1
        %s245 = scalar_lea.sflag [#allocation4], %s244
        %s246 = sand.u32 %s31, 1
        %s247 = smul.addr %s246, 24
        %s248 = scalar_lea.vmem [#allocation3], %s247
        %p249 = pneg %p44
        %p250 = pneg %p41
        %p251 = pneg %p65
        %p252 = pneg %p62
        %p253 = pneg %p86
        %p254 = pneg %p83
        %p255 = pneg %p107
        %p256 = pneg %p104
        %p257 = pneg %p128
        %p258 = pneg %p125
        %p259 = pneg %p149
        %p260 = pneg %p146
        %p261 = pneg %p175
        %p262 = pneg %p172
        %s263 = sand.u32 %s162, 1
        %s264 = scalar_lea.sflag [#allocation5], %s263
        %s265 = sand.u32 %s162, 1
        %s266 = smul.addr %s265, 24
        %s267 = scalar_lea.vmem [#allocation6], %s266
        %v268 = vld [vmem:[%s239] sm:$0xff]
        %v269 = vld [vmem:[%s239 + $0x8] sm:$0xff]
        %v270 = vld [vmem:[%s239 + $0x10] sm:$0xff]
        %271 = vst [vmem:[#allocation2] sm:$0xff] %v268
        %272 = vst [vmem:[#allocation2 + $0x8] sm:$0xff] %v269
        %273 = vst [vmem:[#allocation2 + $0x10] sm:$0xff] %v270
        %274 = vrot.lane.b32.xlu0 %v268, 127
        %v275 = vpop.permute.xlu0 %274
        %276 = vrot.lane.b32.xlu0 %v269, 127
        %v277 = vpop.permute.xlu0 %276
        %278 = vrot.lane.b32.xlu0 %v270, 127
        %v279 = vpop.permute.xlu0 %278
        %v280 = vlaneseq
        %v281 = vand.u32 %v280, 127
        %vm282 = vcmp.lt.s32.totalorder %v281, 127
        %v283 = vsel %vm282, %v277, %v279
        %v284 = vsel %vm282, %v275, %v277
        %v285 = vsel %vm282, %v279, %v275
        %286 = vst [vmem:[#allocation2 + $0x18] sm:$0xff] %v284
        %287 = vst [vmem:[#allocation2 + $0x20] sm:$0xff] %v283
        %288 = vst [vmem:[#allocation2 + $0x28] sm:$0xff] %v285
        %289 = vrot.lane.b32.xlu0 %v268, 126
        %v290 = vpop.permute.xlu0 %289
        %291 = vrot.lane.b32.xlu0 %v269, 126
        %v292 = vpop.permute.xlu0 %291
        %293 = vrot.lane.b32.xlu0 %v270, 126
        %v294 = vpop.permute.xlu0 %293
        %vm295 = vcmp.lt.s32.totalorder %v281, 126
        %v296 = vsel %vm295, %v292, %v294
        %v297 = vsel %vm295, %v290, %v292
        %v298 = vsel %vm295, %v294, %v290
        %299 = vst [vmem:[#allocation2 + $0x30] sm:$0xff] %v297
        %300 = vst [vmem:[#allocation2 + $0x38] sm:$0xff] %v296
        %301 = vst [vmem:[#allocation2 + $0x40] sm:$0xff] %v298
        %302 = vrot.lane.b32.xlu0 %v268, 110
        %v303 = vpop.permute.xlu0 %302
        %304 = vrot.lane.b32.xlu0 %v269, 110
        %v305 = vpop.permute.xlu0 %304
        %306 = vrot.lane.b32.xlu0 %v270, 110
        %v307 = vpop.permute.xlu0 %306
        %vm308 = vcmp.lt.s32.totalorder %v281, 110
        %v309 = vsel %vm308, %v305, %v307
        %v310 = vsel %vm308, %v303, %v305
        %v311 = vsel %vm308, %v307, %v303
        %312 = vst [vmem:[#allocation2 + $0x48] sm:$0xff] %v310
        %313 = vst [vmem:[#allocation2 + $0x50] sm:$0xff] %v309
        %314 = vst [vmem:[#allocation2 + $0x58] sm:$0xff] %v311
        %315 = vrot.lane.b32.xlu0 %v268, 109
        %v316 = vpop.permute.xlu0 %315
        %317 = vrot.lane.b32.xlu0 %v269, 109
        %v318 = vpop.permute.xlu0 %317
        %319 = vrot.lane.b32.xlu0 %v270, 109
        %v320 = vpop.permute.xlu0 %319
        %vm321 = vcmp.lt.s32.totalorder %v281, 109
        %v322 = vsel %vm321, %v318, %v320
        %v323 = vsel %vm321, %v316, %v318
        %v324 = vsel %vm321, %v320, %v316
        %325 = vst [vmem:[#allocation2 + $0x60] sm:$0xff] %v323
        %326 = vst [vmem:[#allocation2 + $0x68] sm:$0xff] %v322
        %327 = vst [vmem:[#allocation2 + $0x70] sm:$0xff] %v324
        %328 = vrot.lane.b32.xlu0 %v268, 108
        %v329 = vpop.permute.xlu0 %328
        %330 = vrot.lane.b32.xlu0 %v269, 108
        %v331 = vpop.permute.xlu0 %330
        %332 = vrot.lane.b32.xlu0 %v270, 108
        %v333 = vpop.permute.xlu0 %332
        %vm334 = vcmp.lt.s32.totalorder %v281, 108
        %v335 = vsel %vm334, %v331, %v333
        %v336 = vsel %vm334, %v329, %v331
        %v337 = vsel %vm334, %v333, %v329
        %338 = vst [vmem:[#allocation2 + $0x78] sm:$0xff] %v336
        %339 = vst [vmem:[#allocation2 + $0x80] sm:$0xff] %v335
        %340 = vst [vmem:[#allocation2 + $0x88] sm:$0xff] %v337
        %341 = vrot.lane.b32.xlu0 %v268, 92
        %v342 = vpop.permute.xlu0 %341
        %343 = vrot.lane.b32.xlu0 %v269, 92
        %v344 = vpop.permute.xlu0 %343
        %345 = vrot.lane.b32.xlu0 %v270, 92
        %v346 = vpop.permute.xlu0 %345
        %vm347 = vcmp.lt.s32.totalorder %v281, 92
        %v348 = vsel %vm347, %v344, %v346
        %v349 = vsel %vm347, %v342, %v344
        %v350 = vsel %vm347, %v346, %v342
        %351 = vst [vmem:[#allocation2 + $0x90] sm:$0xff] %v349
        %352 = vst [vmem:[#allocation2 + $0x98] sm:$0xff] %v348
        %353 = vst [vmem:[#allocation2 + $0xa0] sm:$0xff] %v350
        %354 = vrot.lane.b32.xlu0 %v268, 91
        %v355 = vpop.permute.xlu0 %354
        %356 = vrot.lane.b32.xlu0 %v269, 91
        %v357 = vpop.permute.xlu0 %356
        %358 = vrot.lane.b32.xlu0 %v270, 91
        %v359 = vpop.permute.xlu0 %358
        %vm360 = vcmp.lt.s32.totalorder %v281, 91
        %v361 = vsel %vm360, %v357, %v359
        %v362 = vsel %vm360, %v355, %v357
        %v363 = vsel %vm360, %v359, %v355
        %364 = vst [vmem:[#allocation2 + $0xa8] sm:$0xff] %v362
        %365 = vst [vmem:[#allocation2 + $0xb0] sm:$0xff] %v361
        %366 = vst [vmem:[#allocation2 + $0xb8] sm:$0xff] %v363
        %367 = vrot.lane.b32.xlu0 %v268, 90
        %v368 = vpop.permute.xlu0 %367
        %369 = vrot.lane.b32.xlu0 %v269, 90
        %v370 = vpop.permute.xlu0 %369
        %371 = vrot.lane.b32.xlu0 %v270, 90
        %v372 = vpop.permute.xlu0 %371
        %vm373 = vcmp.lt.s32.totalorder %v281, 90
        %v374 = vsel %vm373, %v370, %v372
        %v375 = vsel %vm373, %v368, %v370
        %v376 = vsel %vm373, %v372, %v368
        %377 = vst [vmem:[#allocation2 + $0xc0] sm:$0xff] %v375
        %378 = vst [vmem:[#allocation2 + $0xc8] sm:$0xff] %v374
        %379 = vst [vmem:[#allocation2 + $0xd0] sm:$0xff] %v376
        %v380 = vld [vmem:[%s1] sm:$0xff]
        %v381 = vld [vmem:[#allocation2] sm:$0xff]
        %v382 = vld [vmem:[#allocation2 + $0x8] sm:$0xff]
        %v383 = vld [vmem:[#allocation2 + $0x10] sm:$0xff]
        %v384 = vld [vmem:[#allocation2 + $0x18] sm:$0xff]
        %v385 = vld [vmem:[#allocation2 + $0x20] sm:$0xff]
        %v386 = vld [vmem:[#allocation2 + $0x28] sm:$0xff]
        %v387 = vld [vmem:[#allocation2 + $0x30] sm:$0xff]
        %v388 = vld [vmem:[#allocation2 + $0x38] sm:$0xff]
        %v389 = vld [vmem:[#allocation2 + $0x40] sm:$0xff]
        %v390 = vld [vmem:[#allocation2 + $0x48] sm:$0xff]
        %v391 = vld [vmem:[#allocation2 + $0x50] sm:$0xff]
        %v392 = vld [vmem:[#allocation2 + $0x58] sm:$0xff]
        %v393 = vld [vmem:[#allocation2 + $0x60] sm:$0xff]
        %v394 = vld [vmem:[#allocation2 + $0x68] sm:$0xff]
        %v395 = vld [vmem:[#allocation2 + $0x70] sm:$0xff]
        %v396 = vld [vmem:[#allocation2 + $0x78] sm:$0xff]
        %v397 = vld [vmem:[#allocation2 + $0x80] sm:$0xff]
        %v398 = vld [vmem:[#allocation2 + $0x88] sm:$0xff]
        %v399 = vld [vmem:[#allocation2 + $0x90] sm:$0xff]
        %v400 = vld [vmem:[#allocation2 + $0x98] sm:$0xff]
        %v401 = vld [vmem:[#allocation2 + $0xa0] sm:$0xff]
        %v402 = vld [vmem:[#allocation2 + $0xa8] sm:$0xff]
        %v403 = vld [vmem:[#allocation2 + $0xb0] sm:$0xff]
        %v404 = vld [vmem:[#allocation2 + $0xb8] sm:$0xff]
        %v405 = vld [vmem:[#allocation2 + $0xc0] sm:$0xff]
        %v406 = vld [vmem:[#allocation2 + $0xc8] sm:$0xff]
        %v407 = vld [vmem:[#allocation2 + $0xd0] sm:$0xff]
        %v408 = vld [vmem:[%s2] sm:$0xff]
        %410 = vset.pattern.permute.xlu0 0
        %411 = vperm.xlu0 %410, %v408
        %v412 = vpop.permute.xlu0 %411
        %vm414 = vcmask 588800
        %v416 = vsel %vm414, %v380, 0
        %418 = vmatprep.subr.mxu0 %v382
        %419 = vmatpush1.msra.mxu0 %v381
        %420 = vmatprep.subr.mxu0 %v385
        %421 = vmatpush1.msra.mxu0 %v384
        %422 = vmatprep.subr.mxu0 %v388
        %423 = vmatpush1.msra.mxu0 %v387
        %424 = vmatprep.subr.mxu0 %v391
        %425 = vmatpush1.msra.mxu0 %v390
        %426 = vmatprep.subr.mxu0 %v394
        %427 = vmatpush1.msra.mxu0 %v393
        %428 = vmatprep.subr.mxu0 %v397
        %429 = vmatpush1.msra.mxu0 %v396
        %430 = vmatprep.subr.mxu0 %v400
        %431 = vmatpush1.msra.mxu0 %v399
        %432 = vmatprep.subr.mxu0 %v403
        %433 = vmatpush1.msra.mxu0 %v402
        %434 = vmatprep.subr.mxu0 %v406
        %435 = vmatpush1.msra.mxu0 %v405
        %436 = vmatprep.subr.mxu0 0.0
        %437 = vmatpush1.msra.mxu0 0.0
        %438 = vmatprep.subr.mxu0 0.0
        %439 = vmatpush1.msra.mxu0 0.0
        %440 = vmatprep.subr.mxu0 0.0
        %441 = vmatpush1.msra.mxu0 0.0
        %442 = vmatprep.subr.mxu0 0.0
        %443 = vmatpush1.msra.mxu0 0.0
        %444 = vmatprep.subr.mxu0 0.0
        %445 = vmatpush1.msra.mxu0 0.0
        %446 = vmatprep.subr.mxu0 0.0
        %447 = vmatpush1.msra.mxu0 0.0
        %448 = vmatprep.subr.mxu0 0.0
        %449 = vmatpush1.msra.mxu0 0.0
        %450 = vmatprep.subr.mxu0 0.0
        %451 = vmatpush1.msra.mxu0 0.0
        %452 = vmatprep.subr.mxu0 0.0
        %453 = vmatpush1.msra.mxu0 0.0
        %454 = vmatprep.subr.mxu0 0.0
        %455 = vmatpush1.msra.mxu0 0.0
        %456 = vmatprep.subr.mxu0 0.0
        %457 = vmatpush1.msra.mxu0 0.0
        %458 = vmatprep.subr.mxu0 0.0
        %459 = vmatpush1.msra.mxu0 0.0
        %460 = vmatprep.subr.mxu0 0.0
        %461 = vmatpush1.msra.mxu0 0.0
        %462 = vmatprep.subr.mxu0 0.0
        %463 = vmatpush1.msra.mxu0 0.0
        %464 = vmatprep.subr.mxu0 0.0
        %465 = vmatpush1.msra.mxu0 0.0
        %466 = vmatprep.subr.mxu0 0.0
        %467 = vmatpush1.msra.mxu0 0.0
        %468 = vmatprep.subr.mxu0 0.0
        %469 = vmatpush1.msra.mxu0 0.0
        %470 = vmatprep.subr.mxu0 0.0
        %471 = vmatpush1.msra.mxu0 0.0
        %472 = vmatprep.subr.mxu0 0.0
        %473 = vmatpush1.msra.mxu0 0.0
        %474 = vmatprep.subr.mxu0 0.0
        %475 = vmatpush1.msra.mxu0 0.0
        %476 = vmatprep.subr.mxu0 0.0
        %477 = vmatpush1.msra.mxu0 0.0
        %478 = vmatprep.subr.mxu0 0.0
        %479 = vmatpush1.msra.mxu0 0.0
        %480 = vmatprep.subr.mxu0 0.0
        %481 = vmatpush1.msra.mxu0 0.0
        %482 = vmatprep.mubr.f32.mxu0 0.0
        %483 = vmatmul.mubr.f32.gmra.mrb[0].mxu0 %v416
        %v484 = vpop.f32.mrb[0].mxu0
        %v485 = vadd.f32 %v412, %v484
        %v486 = vpop.f32.mrb[0].mxu0
        %v487 = vadd.f32 %v412, %v486
        %488 = vdwg.mxu0
        %489 = vmatprep.subr.mxu0 0.0
        %490 = vmatpush1.msra.mxu0 %v383
        %491 = vmatprep.subr.mxu0 0.0
        %492 = vmatpush1.msra.mxu0 %v386
        %493 = vmatprep.subr.mxu0 0.0
        %494 = vmatpush1.msra.mxu0 %v389
        %495 = vmatprep.subr.mxu0 0.0
        %496 = vmatpush1.msra.mxu0 %v392
        %497 = vmatprep.subr.mxu0 0.0
        %498 = vmatpush1.msra.mxu0 %v395
        %499 = vmatprep.subr.mxu0 0.0
        %500 = vmatpush1.msra.mxu0 %v398
        %501 = vmatprep.subr.mxu0 0.0
        %502 = vmatpush1.msra.mxu0 %v401
        %503 = vmatprep.subr.mxu0 0.0
        %504 = vmatpush1.msra.mxu0 %v404
        %505 = vmatprep.subr.mxu0 0.0
        %506 = vmatpush1.msra.mxu0 %v407
        %507 = vmatprep.subr.mxu0 0.0
        %508 = vmatpush1.msra.mxu0 0.0
        %509 = vmatprep.subr.mxu0 0.0
        %510 = vmatpush1.msra.mxu0 0.0
        %511 = vmatprep.subr.mxu0 0.0
        %512 = vmatpush1.msra.mxu0 0.0
        %513 = vmatprep.subr.mxu0 0.0
        %514 = vmatpush1.msra.mxu0 0.0
        %515 = vmatprep.subr.mxu0 0.0
        %516 = vmatpush1.msra.mxu0 0.0
        %517 = vmatprep.subr.mxu0 0.0
        %518 = vmatpush1.msra.mxu0 0.0
        %519 = vmatprep.subr.mxu0 0.0
        %520 = vmatpush1.msra.mxu0 0.0
        %521 = vmatprep.subr.mxu0 0.0
        %522 = vmatpush1.msra.mxu0 0.0
        %523 = vmatprep.subr.mxu0 0.0
        %524 = vmatpush1.msra.mxu0 0.0
        %525 = vmatprep.subr.mxu0 0.0
        %526 = vmatpush1.msra.mxu0 0.0
        %527 = vmatprep.subr.mxu0 0.0
        %528 = vmatpush1.msra.mxu0 0.0
        %529 = vmatprep.subr.mxu0 0.0
        %530 = vmatpush1.msra.mxu0 0.0
        %531 = vmatprep.subr.mxu0 0.0
        %532 = vmatpush1.msra.mxu0 0.0
        %533 = vmatprep.subr.mxu0 0.0
        %534 = vmatpush1.msra.mxu0 0.0
        %535 = vmatprep.subr.mxu0 0.0
        %536 = vmatpush1.msra.mxu0 0.0
        %537 = vmatprep.subr.mxu0 0.0
        %538 = vmatpush1.msra.mxu0 0.0
        %539 = vmatprep.subr.mxu0 0.0
        %540 = vmatpush1.msra.mxu0 0.0
        %541 = vmatprep.subr.mxu0 0.0
        %542 = vmatpush1.msra.mxu0 0.0
        %543 = vmatprep.subr.mxu0 0.0
        %544 = vmatpush1.msra.mxu0 0.0
        %545 = vmatprep.subr.mxu0 0.0
        %546 = vmatpush1.msra.mxu0 0.0
        %547 = vmatprep.subr.mxu0 0.0
        %548 = vmatpush1.msra.mxu0 0.0
        %549 = vmatprep.subr.mxu0 0.0
        %550 = vmatpush1.msra.mxu0 0.0
        %551 = vmatprep.subr.mxu0 0.0
        %552 = vmatpush1.msra.mxu0 0.0
        %553 = vmatprep.mubr.f32.mxu0 0.0
        %554 = vmatmul.mubr.f32.gmra.mrb[0].mxu0 %v416
        %v555 = vpop.f32.mrb[0].mxu0
        %v556 = vadd.f32 %v412, %v555
        %v557 = vpop.f32.mrb[0].mxu0
        %558 = vdwg.mxu0
        %v559 = vld [vmem:[%s5] sm:$0x7]
        %v561 = vlaneseq
        %v562 = vshrl.u32 %v561, 7
        %v563 = vsub.s32 0, %v562
        %v564 = vrot.slane %v559, %v563
        %v565 = vlaneseq
        %v566 = vshrl.u32 %v565, 7
        %v567 = vsub.s32 1, %v566
        %v568 = vrot.slane %v559, %v567
        %v569 = vlaneseq
        %v570 = vshrl.u32 %v569, 7
        %v571 = vsub.s32 2, %v570
        %v572 = vrot.slane %v559, %v571
        %v576 = vmul.f32 %v485, %v564
        %v577 = vmul.f32 %v487, %v568
        %v578 = vmul.f32 %v556, %v572
        %v579 = vadd.f32 %v576, %v577
        %v580 = vadd.f32 %v579, %v578
        %581 = vadd.xlane.f32.xlu0 %v580
        %v582 = vpop.xlane.xlu0 %581
        %vm583 = vcmask 7168
        %v584 = vsel %vm583, %v582, 0.0
        %585 = vadd.xlane.f32.xlu0 %v584
        %v586 = vpop.xlane.xlu0 %585
        %v587 = vrot.slane %v586, 4
        %v588 = vadd.f32 %v586, %v587
        %v589 = vrot.slane %v588, 2
        %v590 = vadd.f32 %v588, %v589
        %v591 = vrot.slane %v590, 1
        %v592 = vadd.f32 %v590, %v591
        %s593 = vtos %v592
        %s594 = smul.f32 %s593, 0.00048828125
        %v595 = vstv %s594
        %v596 = vsub.f32 %v485, %v595
        %v597 = vsub.f32 %v487, %v595
        %v598 = vsub.f32 %v556, %v595
        %v599 = vmul.f32 %v596, %v564
        %v600 = vmul.f32 %v597, %v568
        %v601 = vmul.f32 %v598, %v572
        %v602 = vmul.f32 %v599, %v599
        %v603 = vmul.f32 %v600, %v600
        %v604 = vmul.f32 %v601, %v601
        %v605 = vadd.f32 %v602, %v603
        %v606 = vadd.f32 %v605, %v604
        %607 = vadd.xlane.f32.xlu0 %v606
        %v608 = vpop.xlane.xlu0 %607
        %v609 = vsel %vm583, %v608, 0.0
        %610 = vadd.xlane.f32.xlu0 %v609
        %v611 = vpop.xlane.xlu0 %610
        %v612 = vrot.slane %v611, 4
        %v613 = vadd.f32 %v611, %v612
        %v614 = vrot.slane %v613, 2
        %v615 = vadd.f32 %v613, %v614
        %v616 = vrot.slane %v615, 1
        %v617 = vadd.f32 %v615, %v616
        %s618 = vtos %v617
        %s619 = smul.f32 %s618, 0.00048828125
        %s620 = sadd.f32 %s619, 1e-05
        %v621 = vstv %s620
        %v622 = vrsqrt.pop %v621
        %s623 = vtos %v622
        %v624 = vld [vmem:[%s3] sm:$0xff]
        %v625 = vstv %s623
        %v626 = vmul.f32 %v624, %v625
        %v627 = vld [vmem:[%s4] sm:$0xff]
        %v628 = vmul.f32 %v595, %v626
        %v629 = vsub.f32 %v627, %v628
        %631 = vset.pattern.permute.xlu0 0
        %632 = vperm.xlu0 %631, %v626
        %v633 = vpop.permute.xlu0 %632
        %v635 = vmul.f32 %v485, %v633
        %v636 = vmul.f32 %v487, %v633
        %v637 = vmul.f32 %v556, %v633
        %639 = vset.pattern.permute.xlu0 0
        %640 = vperm.xlu0 %639, %v629
        %v641 = vpop.permute.xlu0 %640
        %v643 = vadd.f32 %v635, %v641
        %v644 = vadd.f32 %v636, %v641
        %v645 = vadd.f32 %v637, %v641
        %v646 = vmul.f32 %v643, 0.02
        %v647 = vmul.f32 %v644, 0.02
        %v648 = vmul.f32 %v645, 0.02
        %v649 = vmax.f32 %v643, %v646
        %v650 = vmax.f32 %v644, %v647
        %v651 = vmax.f32 %v645, %v648
        %652 = vst [vmem:[%s267] sm:$0xff] %v649
        %653 = vst [vmem:[%s267 + $0x8] sm:$0xff] %v650
        %654 = vst [vmem:[%s267 + $0x10] sm:$0xff] %v651
        %s655 = sand.u32 %s162, 1
        %s656 = scalar_lea.sflag [#allocation5], %s655
        %s657 = sand.u32 %s162, 1
        %s658 = smul.addr %s657, 24
        %s659 = scalar_lea.vmem [#allocation6], %s658
        // Predicated region
        $region49: #{tpu_custom_call.1} parent=43 // pred_check
          %p660 = pneg %p172
        $region50: #{tpu_custom_call.1} parent=43 // pred_check_branch
          %662 = sbr.rel (%p660) target = $region52
        $region51: #{tpu_custom_call.1} parent=43 // pred_region
          %s664 = ssub.s32 384, 384
          %665 = vsyncadd %s656, %s664
          %s666 = smul.addr %s23, 3
          %s667 = smul.addr %s666, 128
          %s668 = scalar_lea.hbm %s6, %s667
          %s670 = sshll.u32 %s659, 4
          %s671 = int_to_ptr.vmem [resolvable:$true] %s670
          %673 = dma.vmem_to_hbm [thread:$0]  %s671, 384, %s668, %s656
        $region52: #{tpu_custom_call.1} parent=43 // pred_fallthru
          _
      $region44: #{tpu_custom_call.1} parent=5 // pred_fallthru
        _
      %p674 = scmp.le.s32.totalorder 2, %s18
      // Predicated region
      $region53: #{tpu_custom_call.1} parent=5 // pred_check
        %p675 = pneg %p674
      $region54: #{tpu_custom_call.1} parent=5 // pred_check_branch
        %677 = sbr.rel (%p675) target = $region56
      $region55: #{tpu_custom_call.1} parent=5 // pred_region
        %s678 = ssub.s32 %s18, 2
        // Predicated region
        $region57: #{tpu_custom_call.1} parent=55 // pred_check
          %p679 = pneg %p178
        $region58: #{tpu_custom_call.1} parent=55 // pred_check_branch
          %681 = sbr.rel (%p679) target = $region60
        $region59: #{tpu_custom_call.1} parent=55 // pred_region
          %s682 = sand.u32 %s163, 1
          %s683 = scalar_lea.sflag [#allocation5], %s682
          %s684 = sand.u32 %s163, 1
          %s685 = smul.addr %s684, 24
          %s686 = scalar_lea.vmem [#allocation6], %s685
          %687 = dma.done %s683, 384
        $region60: #{tpu_custom_call.1} parent=55 // pred_fallthru
          _
      $region56: #{tpu_custom_call.1} parent=5 // pred_fallthru
        _
    $region6: #{tpu_custom_call.1} parent=1 // loop_footer
      %s22 = sadd.s32 1, %s18
    $region7: #{tpu_custom_call.1} parent=1 // loop_footer_branch
      %17 = sbr.rel target = $region3
    $region8: #{tpu_custom_call.1} parent=1 // loop_exit
      _
    %688 = vsyncpa [#allocation4], 1
    %s689 = scalar_lea.sflag [#allocation4], 1
    %690 = vsyncpa %s689, 1
    %691 = vsyncpa [#allocation5], 1
    %s692 = scalar_lea.sflag [#allocation5], 1
    %693 = vsyncpa %s692, 1

// kernel: tpu_custom_call.1
$region0: #{tpu_custom_call.1}
  #allocation0 [shape = 'u32[]', space=smem, size = 0x4, offset = 0x4, fixed_abs, tag = 'smem constant byte address 0x4 - core index']
  #allocation1 [shape = 'u32[144,128]{1,0:T(1,128)}', space=vmem, size = 0x12000, scoped, tag = 'internal scratch']
  #allocation2 [shape = 'f32[72,384]{1,0:T(8,128)}', space=vmem, size = 0x1b000, scoped, tag = 'scratch operand']
  %s0 = inlined_call_operand.hbm [shape: f32[2,8,384], index: 0, kind: input, shape index: {}]
  %s1 = inlined_call_operand.vmem [shape: f32[8,72], index: 1, kind: input, shape index: {}]
  %s2 = inlined_call_operand.vmem [shape: f32[8,1], index: 2, kind: input, shape index: {}]
  %s3 = inlined_call_operand.vmem [shape: f32[8,1], index: 3, kind: input, shape index: {}]
  %s4 = inlined_call_operand.vmem [shape: f32[8,1], index: 4, kind: input, shape index: {}]
  %s5 = inlined_call_operand.vmem [shape: f32[1,384], index: 5, kind: input, shape index: {}]
  %s6 = inlined_call_operand.hbm [shape: f32[2,8,384], index: 6, kind: output, shape index: {}]
  %s7 = sld [smem:[#allocation0]]
  $region61: #{tpu_custom_call.1} parent=0
    _
  %s9 = ssub.s32 1, %s7
  %s10 = scalar_select 0, %s9, %s7
  $region1: #{tpu_custom_call.1} parent=0
    #allocation3 [shape = 'u8[24576]{0}', space=vmem, size = 0x6000, scoped, tag = 'input window, operand 0']
    #allocation4 [shape = 's32[2]{0}', space=sflag, size = 0x8, scoped, tag = 'scoped memory for tpu_custom_call.1']
    #allocation5 [shape = 's32[2]{0}', space=sflag, size = 0x8, scoped, tag = 'scoped memory for tpu_custom_call.1']
    #allocation6 [shape = 'u8[24576]{0}', space=vmem, size = 0x6000, scoped, tag = 'output window, operand 0']
    %11 = vsyncpa [#allocation4], 0
    %s12 = scalar_lea.sflag [#allocation4], 1
    %13 = vsyncpa %s12, 0
    %14 = vsyncpa [#allocation5], 0
    %s15 = scalar_lea.sflag [#allocation5], 1
    %16 = vsyncpa %s15, 0
    loop: start=0, step=1, limit=4
    $region2: #{tpu_custom_call.1} parent=1 // loop_pre_header
      _
    $region3: #{tpu_custom_call.1} parent=1 // loop_header
      %s18 = sphi 0, %s22
      %p19 = scmp.ge.s32.totalorder %s18, 4
      %s28 = sphi 0, %s30
      %s31 = sphi 0, %s28
      %s32 = sphi 0, %s31
      %s48 = sphi 0, %s32
      %s52 = sphi 0, %s52
      %s54 = sphi 0, %s52
      %s55 = sphi 0, %s54
      %s69 = sphi 0, %s55
      %s73 = sphi 0, %s73
      %s75 = sphi 0, %s73
      %s76 = sphi 0, %s75
      %s90 = sphi 0, %s76
      %s94 = sphi 0, %s94
      %s96 = sphi 0, %s94
      %s97 = sphi 0, %s96
      %s111 = sphi 0, %s97
      %s115 = sphi 0, %s115
      %s117 = sphi 0, %s115
      %s118 = sphi 0, %s117
      %s132 = sphi 0, %s118
      %s136 = sphi 0, %s136
      %s138 = sphi 0, %s136
      %s139 = sphi 0, %s138
      %s153 = sphi 0, %s139
      %s159 = sphi 0, %s161
      %s162 = sphi 0, %s159
      %s163 = sphi 0, %s162
      %s179 = sphi 0, %s163
    $region4: #{tpu_custom_call.1} parent=1 // loop_header_branch
      %21 = sbr.rel (%p19) target = $region8
    $region5: #{tpu_custom_call.1} parent=1 // loop_body
      %s23 = ssub.s32 %s18, 1
      %s24 = ssub.s32 %s18, 2
      %s25 = sadd.s32 %s18, 1
      %s26 = ssub.s32 %s18, %s25
      %p27 = scmp.eq.s32.totalorder %s26, 0
      %s29 = sadd.s32 %s28, 1
      %s30 = scalar_select %p27, %s28, %s29
      %p33 = pneg %p27
      %p34 = scmp.eq.s32.totalorder %s18, 1
      %p35 = por %p33, %p34
      %p36 = scmp.ne.s32.totalorder %s28, %s31
      %p37 = scmp.eq.s32.totalorder %s18, 0
      %p38 = por %p36, %p37
      %p39 = scmp.ne.s32.totalorder %s28, %s31
      %p40 = scmp.eq.s32.totalorder %s23, 1
      %p41 = por %p39, %p40
      %p42 = scmp.ne.s32.totalorder %s31, %s32
      %p43 = scmp.eq.s32.totalorder %s23, 0
      %p44 = por %p42, %p43
      %p45 = scmp.ne.s32.totalorder %s31, %s32
      %p46 = scmp.eq.s32.totalorder %s24, 1
      %p47 = por %p45, %p46
      %p49 = scmp.ne.s32.totalorder %s32, %s48
      %p50 = scmp.eq.s32.totalorder %s24, 0
      %p51 = por %p49, %p50
      %s53 = sadd.s32 %s52, 1
      %p56 = scmp.eq.s32.totalorder %s18, 1
      %p57 = scmp.ne.s32.totalorder %s52, %s54
      %p58 = scmp.eq.s32.totalorder %s18, 0
      %p59 = por %p57, %p58
      %p60 = scmp.ne.s32.totalorder %s52, %s54
      %p61 = scmp.eq.s32.totalorder %s23, 1
      %p62 = por %p60, %p61
      %p63 = scmp.ne.s32.totalorder %s54, %s55
      %p64 = scmp.eq.s32.totalorder %s23, 0
      %p65 = por %p63, %p64
      %p66 = scmp.ne.s32.totalorder %s54, %s55
      %p67 = scmp.eq.s32.totalorder %s24, 1
      %p68 = por %p66, %p67
      %p70 = scmp.ne.s32.totalorder %s55, %s69
      %p71 = scmp.eq.s32.totalorder %s24, 0
      %p72 = por %p70, %p71
      %s74 = sadd.s32 %s73, 1
      %p77 = scmp.eq.s32.totalorder %s18, 1
      %p78 = scmp.ne.s32.totalorder %s73, %s75
      %p79 = scmp.eq.s32.totalorder %s18, 0
      %p80 = por %p78, %p79
      %p81 = scmp.ne.s32.totalorder %s73, %s75
      %p82 = scmp.eq.s32.totalorder %s23, 1
      %p83 = por %p81, %p82
      %p84 = scmp.ne.s32.totalorder %s75, %s76
      %p85 = scmp.eq.s32.totalorder %s23, 0
      %p86 = por %p84, %p85
      %p87 = scmp.ne.s32.totalorder %s75, %s76
      %p88 = scmp.eq.s32.totalorder %s24, 1
      %p89 = por %p87, %p88
      %p91 = scmp.ne.s32.totalorder %s76, %s90
      %p92 = scmp.eq.s32.totalorder %s24, 0
      %p93 = por %p91, %p92
      %s95 = sadd.s32 %s94, 1
      %p98 = scmp.eq.s32.totalorder %s18, 1
      %p99 = scmp.ne.s32.totalorder %s94, %s96
      %p100 = scmp.eq.s32.totalorder %s18, 0
      %p101 = por %p99, %p100
      %p102 = scmp.ne.s32.totalorder %s94, %s96
      %p103 = scmp.eq.s32.totalorder %s23, 1
      %p104 = por %p102, %p103
      %p105 = scmp.ne.s32.totalorder %s96, %s97
      %p106 = scmp.eq.s32.totalorder %s23, 0
      %p107 = por %p105, %p106
      %p108 = scmp.ne.s32.totalorder %s96, %s97
      %p109 = scmp.eq.s32.totalorder %s24, 1
      %p110 = por %p108, %p109
      %p112 = scmp.ne.s32.totalorder %s97, %s111
      %p113 = scmp.eq.s32.totalorder %s24, 0
      %p114 = por %p112, %p113
      %s116 = sadd.s32 %s115, 1
      %p119 = scmp.eq.s32.totalorder %s18, 1
      %p120 = scmp.ne.s32.totalorder %s115, %s117
      %p121 = scmp.eq.s32.totalorder %s18, 0
      %p122 = por %p120, %p121
      %p123 = scmp.ne.s32.totalorder %s115, %s117
      %p124 = scmp.eq.s32.totalorder %s23, 1
      %p125 = por %p123, %p124
      %p126 = scmp.ne.s32.totalorder %s117, %s118
      %p127 = scmp.eq.s32.totalorder %s23, 0
      %p128 = por %p126, %p127
      %p129 = scmp.ne.s32.totalorder %s117, %s118
      %p130 = scmp.eq.s32.totalorder %s24, 1
      %p131 = por %p129, %p130
      %p133 = scmp.ne.s32.totalorder %s118, %s132
      %p134 = scmp.eq.s32.totalorder %s24, 0
      %p135 = por %p133, %p134
      %s137 = sadd.s32 %s136, 1
      %p140 = scmp.eq.s32.totalorder %s18, 1
      %p141 = scmp.ne.s32.totalorder %s136, %s138
      %p142 = scmp.eq.s32.totalorder %s18, 0
      %p143 = por %p141, %p142
      %p144 = scmp.ne.s32.totalorder %s136, %s138
      %p145 = scmp.eq.s32.totalorder %s23, 1
      %p146 = por %p144, %p145
      %p147 = scmp.ne.s32.totalorder %s138, %s139
      %p148 = scmp.eq.s32.totalorder %s23, 0
      %p149 = por %p147, %p148
      %p150 = scmp.ne.s32.totalorder %s138, %s139
      %p151 = scmp.eq.s32.totalorder %s24, 1
      %p152 = por %p150, %p151
      %p154 = scmp.ne.s32.totalorder %s139, %s153
      %p155 = scmp.eq.s32.totalorder %s24, 0
      %p156 = por %p154, %p155
      %s157 = ssub.s32 %s18, %s25
      %p158 = scmp.eq.s32.totalorder %s157, 0
      %s160 = sadd.s32 %s159, 1
      %s161 = scalar_select %p158, %s159, %s160
      %p164 = pneg %p158
      %p165 = scmp.eq.s32.totalorder %s18, 1
      %p166 = por %p164, %p165
      %p167 = scmp.ne.s32.totalorder %s159, %s162
      %p168 = scmp.eq.s32.totalorder %s18, 0
      %p169 = por %p167, %p168
      %p170 = scmp.ne.s32.totalorder %s159, %s162
      %p171 = scmp.eq.s32.totalorder %s23, 1
      %p172 = por %p170, %p171
      %p173 = scmp.ne.s32.totalorder %s162, %s163
      %p174 = scmp.eq.s32.totalorder %s23, 0
      %p175 = por %p173, %p174
      %p176 = scmp.ne.s32.totalorder %s162, %s163
      %p177 = scmp.eq.s32.totalorder %s24, 1
      %p178 = por %p176, %p177
      %p180 = scmp.ne.s32.totalorder %s163, %s179
      %p181 = scmp.eq.s32.totalorder %s24, 0
      %p182 = por %p180, %p181
      %p183 = scmp.le.s32.totalorder 1, %s18
      %p184 = scmp.lt.s32.totalorder %s18, 3
      %p185 = pnand %p183, %p184
      %p186 = pneg %p185
      // Predicated region
      $region9: #{tpu_custom_call.1} parent=5 // pred_check
        _
      $region10: #{tpu_custom_call.1} parent=5 // pred_check_branch
        %188 = sbr.rel (%p185) target = $region12
      $region11: #{tpu_custom_call.1} parent=5 // pred_region
        %s189 = ssub.s32 %s18, 1
        // Predicated region
        $region13: #{tpu_custom_call.1} parent=11 // pred_check
          %p190 = pneg %p65
        $region14: #{tpu_custom_call.1} parent=11 // pred_check_branch
          %192 = sbr.rel (%p190) target = $region16
        $region15: #{tpu_custom_call.1} parent=11 // pred_region
          _
        $region16: #{tpu_custom_call.1} parent=11 // pred_fallthru
          _
        // Predicated region
        $region17: #{tpu_custom_call.1} parent=11 // pred_check
          %p193 = pneg %p86
        $region18: #{tpu_custom_call.1} parent=11 // pred_check_branch
          %195 = sbr.rel (%p193) target = $region20
        $region19: #{tpu_custom_call.1} parent=11 // pred_region
          _
        $region20: #{tpu_custom_call.1} parent=11 // pred_fallthru
          _
        // Predicated region
        $region21: #{tpu_custom_call.1} parent=11 // pred_check
          %p196 = pneg %p107
        $region22: #{tpu_custom_call.1} parent=11 // pred_check_branch
          %198 = sbr.rel (%p196) target = $region24
        $region23: #{tpu_custom_call.1} parent=11 // pred_region
          _
        $region24: #{tpu_custom_call.1} parent=11 // pred_fallthru
          _
        // Predicated region
        $region25: #{tpu_custom_call.1} parent=11 // pred_check
          %p199 = pneg %p128
        $region26: #{tpu_custom_call.1} parent=11 // pred_check_branch
          %201 = sbr.rel (%p199) target = $region28
        $region27: #{tpu_custom_call.1} parent=11 // pred_region
          _
        $region28: #{tpu_custom_call.1} parent=11 // pred_fallthru
          _
        // Predicated region
        $region29: #{tpu_custom_call.1} parent=11 // pred_check
          %p202 = pneg %p149
        $region30: #{tpu_custom_call.1} parent=11 // pred_check_branch
          %204 = sbr.rel (%p202) target = $region32
        $region31: #{tpu_custom_call.1} parent=11 // pred_region
          _
        $region32: #{tpu_custom_call.1} parent=11 // pred_fallthru
          _
      $region12: #{tpu_custom_call.1} parent=5 // pred_fallthru
        _
      %p205 = scmp.lt.s32.totalorder %s18, 2
      // Predicated region
      $region33: #{tpu_custom_call.1} parent=5 // pred_check
        %p206 = pneg %p205
      $region34: #{tpu_custom_call.1} parent=5 // pred_check_branch
        %208 = sbr.rel (%p206) target = $region36
      $region35: #{tpu_custom_call.1} parent=5 // pred_region
        // Predicated region
        $region37: #{tpu_custom_call.1} parent=35 // pred_check
          %p209 = pneg %p38
        $region38: #{tpu_custom_call.1} parent=35 // pred_check_branch
          %211 = sbr.rel (%p209) target = $region40
        $region39: #{tpu_custom_call.1} parent=35 // pred_region
          %s212 = sand.u32 %s28, 1
          %s213 = scalar_lea.sflag [#allocation4], %s212
          %s214 = sand.u32 %s28, 1
          %s215 = smul.addr %s214, 24
          %s216 = scalar_lea.vmem [#allocation3], %s215
          %s218 = ssub.s32 384, 384
          %219 = vsyncadd %s213, %s218
          %s220 = smul.addr %s18, 3
          %s221 = smul.addr %s220, 128
          %s222 = scalar_lea.hbm %s0, %s221
          %s224 = sshll.u32 %s216, 4
          %s225 = int_to_ptr.vmem [resolvable:$true] %s224
          %227 = dma.hbm_to_vmem [thread:$0]  %s222, 384, %s225, %s213
        $region40: #{tpu_custom_call.1} parent=35 // pred_fallthru
          _
      $region36: #{tpu_custom_call.1} parent=5 // pred_fallthru
        _
      %p228 = scmp.le.s32.totalorder 1, %s18
      %p229 = scmp.lt.s32.totalorder %s18, 3
      %p230 = pnand %p228, %p229
      %p231 = pneg %p230
      // Predicated region
      $region41: #{tpu_custom_call.1} parent=5 // pred_check
        _
      $region42: #{tpu_custom_call.1} parent=5 // pred_check_branch
        %233 = sbr.rel (%p230) target = $region44
      $region43: #{tpu_custom_call.1} parent=5 // pred_region
        %s234 = ssub.s32 %s18, 1
        %s235 = sand.u32 %s31, 1
        %s236 = scalar_lea.sflag [#allocation4], %s235
        %s237 = sand.u32 %s31, 1
        %s238 = smul.addr %s237, 24
        %s239 = scalar_lea.vmem [#allocation3], %s238
        // Predicated region
        $region45: #{tpu_custom_call.1} parent=43 // pred_check
          %p240 = pneg %p44
        $region46: #{tpu_custom_call.1} parent=43 // pred_check_branch
          %242 = sbr.rel (%p240) target = $region48
        $region47: #{tpu_custom_call.1} parent=43 // pred_region
          %243 = dma.done %s236, 384
        $region48: #{tpu_custom_call.1} parent=43 // pred_fallthru
          _
        %s244 = sand.u32 %s31, 1
        %s245 = scalar_lea.sflag [#allocation4], %s244
        %s246 = sand.u32 %s31, 1
        %s247 = smul.addr %s246, 24
        %s248 = scalar_lea.vmem [#allocation3], %s247
        %p249 = pneg %p44
        %p250 = pneg %p41
        %p251 = pneg %p65
        %p252 = pneg %p62
        %p253 = pneg %p86
        %p254 = pneg %p83
        %p255 = pneg %p107
        %p256 = pneg %p104
        %p257 = pneg %p128
        %p258 = pneg %p125
        %p259 = pneg %p149
        %p260 = pneg %p146
        %p261 = pneg %p175
        %p262 = pneg %p172
        %s263 = sand.u32 %s162, 1
        %s264 = scalar_lea.sflag [#allocation5], %s263
        %s265 = sand.u32 %s162, 1
        %s266 = smul.addr %s265, 24
        %s267 = scalar_lea.vmem [#allocation6], %s266
        %v268 = vld [vmem:[%s239] sm:$0xff]
        %v269 = vld [vmem:[%s239 + $0x8] sm:$0xff]
        %v270 = vld [vmem:[%s239 + $0x10] sm:$0xff]
        %271 = vst [vmem:[#allocation2] sm:$0xff] %v268
        %272 = vst [vmem:[#allocation2 + $0x8] sm:$0xff] %v269
        %273 = vst [vmem:[#allocation2 + $0x10] sm:$0xff] %v270
        %274 = vrot.lane.b32.xlu0 %v268, 127
        %v275 = vpop.permute.xlu0 %274
        %276 = vrot.lane.b32.xlu0 %v269, 127
        %v277 = vpop.permute.xlu0 %276
        %278 = vrot.lane.b32.xlu0 %v270, 127
        %v279 = vpop.permute.xlu0 %278
        %v280 = vlaneseq
        %v281 = vand.u32 %v280, 127
        %vm282 = vcmp.lt.s32.totalorder %v281, 127
        %v283 = vsel %vm282, %v277, %v279
        %v284 = vsel %vm282, %v275, %v277
        %v285 = vsel %vm282, %v279, %v275
        %286 = vst [vmem:[#allocation2 + $0x18] sm:$0xff] %v284
        %287 = vst [vmem:[#allocation2 + $0x20] sm:$0xff] %v283
        %288 = vst [vmem:[#allocation2 + $0x28] sm:$0xff] %v285
        %289 = vrot.lane.b32.xlu0 %v268, 126
        %v290 = vpop.permute.xlu0 %289
        %291 = vrot.lane.b32.xlu0 %v269, 126
        %v292 = vpop.permute.xlu0 %291
        %293 = vrot.lane.b32.xlu0 %v270, 126
        %v294 = vpop.permute.xlu0 %293
        %vm295 = vcmp.lt.s32.totalorder %v281, 126
        %v296 = vsel %vm295, %v292, %v294
        %v297 = vsel %vm295, %v290, %v292
        %v298 = vsel %vm295, %v294, %v290
        %299 = vst [vmem:[#allocation2 + $0x30] sm:$0xff] %v297
        %300 = vst [vmem:[#allocation2 + $0x38] sm:$0xff] %v296
        %301 = vst [vmem:[#allocation2 + $0x40] sm:$0xff] %v298
        %302 = vrot.lane.b32.xlu0 %v268, 110
        %v303 = vpop.permute.xlu0 %302
        %304 = vrot.lane.b32.xlu0 %v269, 110
        %v305 = vpop.permute.xlu0 %304
        %306 = vrot.lane.b32.xlu0 %v270, 110
        %v307 = vpop.permute.xlu0 %306
        %vm308 = vcmp.lt.s32.totalorder %v281, 110
        %v309 = vsel %vm308, %v305, %v307
        %v310 = vsel %vm308, %v303, %v305
        %v311 = vsel %vm308, %v307, %v303
        %312 = vst [vmem:[#allocation2 + $0x48] sm:$0xff] %v310
        %313 = vst [vmem:[#allocation2 + $0x50] sm:$0xff] %v309
        %314 = vst [vmem:[#allocation2 + $0x58] sm:$0xff] %v311
        %315 = vrot.lane.b32.xlu0 %v268, 109
        %v316 = vpop.permute.xlu0 %315
        %317 = vrot.lane.b32.xlu0 %v269, 109
        %v318 = vpop.permute.xlu0 %317
        %319 = vrot.lane.b32.xlu0 %v270, 109
        %v320 = vpop.permute.xlu0 %319
        %vm321 = vcmp.lt.s32.totalorder %v281, 109
        %v322 = vsel %vm321, %v318, %v320
        %v323 = vsel %vm321, %v316, %v318
        %v324 = vsel %vm321, %v320, %v316
        %325 = vst [vmem:[#allocation2 + $0x60] sm:$0xff] %v323
        %326 = vst [vmem:[#allocation2 + $0x68] sm:$0xff] %v322
        %327 = vst [vmem:[#allocation2 + $0x70] sm:$0xff] %v324
        %328 = vrot.lane.b32.xlu0 %v268, 108
        %v329 = vpop.permute.xlu0 %328
        %330 = vrot.lane.b32.xlu0 %v269, 108
        %v331 = vpop.permute.xlu0 %330
        %332 = vrot.lane.b32.xlu0 %v270, 108
        %v333 = vpop.permute.xlu0 %332
        %vm334 = vcmp.lt.s32.totalorder %v281, 108
        %v335 = vsel %vm334, %v331, %v333
        %v336 = vsel %vm334, %v329, %v331
        %v337 = vsel %vm334, %v333, %v329
        %338 = vst [vmem:[#allocation2 + $0x78] sm:$0xff] %v336
        %339 = vst [vmem:[#allocation2 + $0x80] sm:$0xff] %v335
        %340 = vst [vmem:[#allocation2 + $0x88] sm:$0xff] %v337
        %341 = vrot.lane.b32.xlu0 %v268, 92
        %v342 = vpop.permute.xlu0 %341
        %343 = vrot.lane.b32.xlu0 %v269, 92
        %v344 = vpop.permute.xlu0 %343
        %345 = vrot.lane.b32.xlu0 %v270, 92
        %v346 = vpop.permute.xlu0 %345
        %vm347 = vcmp.lt.s32.totalorder %v281, 92
        %v348 = vsel %vm347, %v344, %v346
        %v349 = vsel %vm347, %v342, %v344
        %v350 = vsel %vm347, %v346, %v342
        %351 = vst [vmem:[#allocation2 + $0x90] sm:$0xff] %v349
        %352 = vst [vmem:[#allocation2 + $0x98] sm:$0xff] %v348
        %353 = vst [vmem:[#allocation2 + $0xa0] sm:$0xff] %v350
        %354 = vrot.lane.b32.xlu0 %v268, 91
        %v355 = vpop.permute.xlu0 %354
        %356 = vrot.lane.b32.xlu0 %v269, 91
        %v357 = vpop.permute.xlu0 %356
        %358 = vrot.lane.b32.xlu0 %v270, 91
        %v359 = vpop.permute.xlu0 %358
        %vm360 = vcmp.lt.s32.totalorder %v281, 91
        %v361 = vsel %vm360, %v357, %v359
        %v362 = vsel %vm360, %v355, %v357
        %v363 = vsel %vm360, %v359, %v355
        %364 = vst [vmem:[#allocation2 + $0xa8] sm:$0xff] %v362
        %365 = vst [vmem:[#allocation2 + $0xb0] sm:$0xff] %v361
        %366 = vst [vmem:[#allocation2 + $0xb8] sm:$0xff] %v363
        %367 = vrot.lane.b32.xlu0 %v268, 90
        %v368 = vpop.permute.xlu0 %367
        %369 = vrot.lane.b32.xlu0 %v269, 90
        %v370 = vpop.permute.xlu0 %369
        %371 = vrot.lane.b32.xlu0 %v270, 90
        %v372 = vpop.permute.xlu0 %371
        %vm373 = vcmp.lt.s32.totalorder %v281, 90
        %v374 = vsel %vm373, %v370, %v372
        %v375 = vsel %vm373, %v368, %v370
        %v376 = vsel %vm373, %v372, %v368
        %377 = vst [vmem:[#allocation2 + $0xc0] sm:$0xff] %v375
        %378 = vst [vmem:[#allocation2 + $0xc8] sm:$0xff] %v374
        %379 = vst [vmem:[#allocation2 + $0xd0] sm:$0xff] %v376
        %v380 = vld [vmem:[%s1] sm:$0xff]
        %v381 = vld [vmem:[#allocation2] sm:$0xff]
        %v382 = vld [vmem:[#allocation2 + $0x8] sm:$0xff]
        %v383 = vld [vmem:[#allocation2 + $0x10] sm:$0xff]
        %v384 = vld [vmem:[#allocation2 + $0x18] sm:$0xff]
        %v385 = vld [vmem:[#allocation2 + $0x20] sm:$0xff]
        %v386 = vld [vmem:[#allocation2 + $0x28] sm:$0xff]
        %v387 = vld [vmem:[#allocation2 + $0x30] sm:$0xff]
        %v388 = vld [vmem:[#allocation2 + $0x38] sm:$0xff]
        %v389 = vld [vmem:[#allocation2 + $0x40] sm:$0xff]
        %v390 = vld [vmem:[#allocation2 + $0x48] sm:$0xff]
        %v391 = vld [vmem:[#allocation2 + $0x50] sm:$0xff]
        %v392 = vld [vmem:[#allocation2 + $0x58] sm:$0xff]
        %v393 = vld [vmem:[#allocation2 + $0x60] sm:$0xff]
        %v394 = vld [vmem:[#allocation2 + $0x68] sm:$0xff]
        %v395 = vld [vmem:[#allocation2 + $0x70] sm:$0xff]
        %v396 = vld [vmem:[#allocation2 + $0x78] sm:$0xff]
        %v397 = vld [vmem:[#allocation2 + $0x80] sm:$0xff]
        %v398 = vld [vmem:[#allocation2 + $0x88] sm:$0xff]
        %v399 = vld [vmem:[#allocation2 + $0x90] sm:$0xff]
        %v400 = vld [vmem:[#allocation2 + $0x98] sm:$0xff]
        %v401 = vld [vmem:[#allocation2 + $0xa0] sm:$0xff]
        %v402 = vld [vmem:[#allocation2 + $0xa8] sm:$0xff]
        %v403 = vld [vmem:[#allocation2 + $0xb0] sm:$0xff]
        %v404 = vld [vmem:[#allocation2 + $0xb8] sm:$0xff]
        %v405 = vld [vmem:[#allocation2 + $0xc0] sm:$0xff]
        %v406 = vld [vmem:[#allocation2 + $0xc8] sm:$0xff]
        %v407 = vld [vmem:[#allocation2 + $0xd0] sm:$0xff]
        %v408 = vld [vmem:[%s2] sm:$0xff]
        %410 = vset.pattern.permute.xlu0 0
        %411 = vperm.xlu0 %410, %v408
        %v412 = vpop.permute.xlu0 %411
        %vm414 = vcmask 588800
        %v416 = vsel %vm414, %v380, 0
        %418 = vmatprep.subr.mxu0 %v382
        %419 = vmatpush1.msra.mxu0 %v381
        %420 = vmatprep.subr.mxu0 %v385
        %421 = vmatpush1.msra.mxu0 %v384
        %422 = vmatprep.subr.mxu0 %v388
        %423 = vmatpush1.msra.mxu0 %v387
        %424 = vmatprep.subr.mxu0 %v391
        %425 = vmatpush1.msra.mxu0 %v390
        %426 = vmatprep.subr.mxu0 %v394
        %427 = vmatpush1.msra.mxu0 %v393
        %428 = vmatprep.subr.mxu0 %v397
        %429 = vmatpush1.msra.mxu0 %v396
        %430 = vmatprep.subr.mxu0 %v400
        %431 = vmatpush1.msra.mxu0 %v399
        %432 = vmatprep.subr.mxu0 %v403
        %433 = vmatpush1.msra.mxu0 %v402
        %434 = vmatprep.subr.mxu0 %v406
        %435 = vmatpush1.msra.mxu0 %v405
        %436 = vmatprep.subr.mxu0 0.0
        %437 = vmatpush1.msra.mxu0 0.0
        %438 = vmatprep.subr.mxu0 0.0
        %439 = vmatpush1.msra.mxu0 0.0
        %440 = vmatprep.subr.mxu0 0.0
        %441 = vmatpush1.msra.mxu0 0.0
        %442 = vmatprep.subr.mxu0 0.0
        %443 = vmatpush1.msra.mxu0 0.0
        %444 = vmatprep.subr.mxu0 0.0
        %445 = vmatpush1.msra.mxu0 0.0
        %446 = vmatprep.subr.mxu0 0.0
        %447 = vmatpush1.msra.mxu0 0.0
        %448 = vmatprep.subr.mxu0 0.0
        %449 = vmatpush1.msra.mxu0 0.0
        %450 = vmatprep.subr.mxu0 0.0
        %451 = vmatpush1.msra.mxu0 0.0
        %452 = vmatprep.subr.mxu0 0.0
        %453 = vmatpush1.msra.mxu0 0.0
        %454 = vmatprep.subr.mxu0 0.0
        %455 = vmatpush1.msra.mxu0 0.0
        %456 = vmatprep.subr.mxu0 0.0
        %457 = vmatpush1.msra.mxu0 0.0
        %458 = vmatprep.subr.mxu0 0.0
        %459 = vmatpush1.msra.mxu0 0.0
        %460 = vmatprep.subr.mxu0 0.0
        %461 = vmatpush1.msra.mxu0 0.0
        %462 = vmatprep.subr.mxu0 0.0
        %463 = vmatpush1.msra.mxu0 0.0
        %464 = vmatprep.subr.mxu0 0.0
        %465 = vmatpush1.msra.mxu0 0.0
        %466 = vmatprep.subr.mxu0 0.0
        %467 = vmatpush1.msra.mxu0 0.0
        %468 = vmatprep.subr.mxu0 0.0
        %469 = vmatpush1.msra.mxu0 0.0
        %470 = vmatprep.subr.mxu0 0.0
        %471 = vmatpush1.msra.mxu0 0.0
        %472 = vmatprep.subr.mxu0 0.0
        %473 = vmatpush1.msra.mxu0 0.0
        %474 = vmatprep.subr.mxu0 0.0
        %475 = vmatpush1.msra.mxu0 0.0
        %476 = vmatprep.subr.mxu0 0.0
        %477 = vmatpush1.msra.mxu0 0.0
        %478 = vmatprep.subr.mxu0 0.0
        %479 = vmatpush1.msra.mxu0 0.0
        %480 = vmatprep.subr.mxu0 0.0
        %481 = vmatpush1.msra.mxu0 0.0
        %482 = vmatprep.mubr.f32.mxu0 0.0
        %483 = vmatmul.mubr.f32.gmra.mrb[0].mxu0 %v416
        %v484 = vpop.f32.mrb[0].mxu0
        %v485 = vadd.f32 %v412, %v484
        %v486 = vpop.f32.mrb[0].mxu0
        %v487 = vadd.f32 %v412, %v486
        %488 = vdwg.mxu0
        %489 = vmatprep.subr.mxu0 0.0
        %490 = vmatpush1.msra.mxu0 %v383
        %491 = vmatprep.subr.mxu0 0.0
        %492 = vmatpush1.msra.mxu0 %v386
        %493 = vmatprep.subr.mxu0 0.0
        %494 = vmatpush1.msra.mxu0 %v389
        %495 = vmatprep.subr.mxu0 0.0
        %496 = vmatpush1.msra.mxu0 %v392
        %497 = vmatprep.subr.mxu0 0.0
        %498 = vmatpush1.msra.mxu0 %v395
        %499 = vmatprep.subr.mxu0 0.0
        %500 = vmatpush1.msra.mxu0 %v398
        %501 = vmatprep.subr.mxu0 0.0
        %502 = vmatpush1.msra.mxu0 %v401
        %503 = vmatprep.subr.mxu0 0.0
        %504 = vmatpush1.msra.mxu0 %v404
        %505 = vmatprep.subr.mxu0 0.0
        %506 = vmatpush1.msra.mxu0 %v407
        %507 = vmatprep.subr.mxu0 0.0
        %508 = vmatpush1.msra.mxu0 0.0
        %509 = vmatprep.subr.mxu0 0.0
        %510 = vmatpush1.msra.mxu0 0.0
        %511 = vmatprep.subr.mxu0 0.0
        %512 = vmatpush1.msra.mxu0 0.0
        %513 = vmatprep.subr.mxu0 0.0
        %514 = vmatpush1.msra.mxu0 0.0
        %515 = vmatprep.subr.mxu0 0.0
        %516 = vmatpush1.msra.mxu0 0.0
        %517 = vmatprep.subr.mxu0 0.0
        %518 = vmatpush1.msra.mxu0 0.0
        %519 = vmatprep.subr.mxu0 0.0
        %520 = vmatpush1.msra.mxu0 0.0
        %521 = vmatprep.subr.mxu0 0.0
        %522 = vmatpush1.msra.mxu0 0.0
        %523 = vmatprep.subr.mxu0 0.0
        %524 = vmatpush1.msra.mxu0 0.0
        %525 = vmatprep.subr.mxu0 0.0
        %526 = vmatpush1.msra.mxu0 0.0
        %527 = vmatprep.subr.mxu0 0.0
        %528 = vmatpush1.msra.mxu0 0.0
        %529 = vmatprep.subr.mxu0 0.0
        %530 = vmatpush1.msra.mxu0 0.0
        %531 = vmatprep.subr.mxu0 0.0
        %532 = vmatpush1.msra.mxu0 0.0
        %533 = vmatprep.subr.mxu0 0.0
        %534 = vmatpush1.msra.mxu0 0.0
        %535 = vmatprep.subr.mxu0 0.0
        %536 = vmatpush1.msra.mxu0 0.0
        %537 = vmatprep.subr.mxu0 0.0
        %538 = vmatpush1.msra.mxu0 0.0
        %539 = vmatprep.subr.mxu0 0.0
        %540 = vmatpush1.msra.mxu0 0.0
        %541 = vmatprep.subr.mxu0 0.0
        %542 = vmatpush1.msra.mxu0 0.0
        %543 = vmatprep.subr.mxu0 0.0
        %544 = vmatpush1.msra.mxu0 0.0
        %545 = vmatprep.subr.mxu0 0.0
        %546 = vmatpush1.msra.mxu0 0.0
        %547 = vmatprep.subr.mxu0 0.0
        %548 = vmatpush1.msra.mxu0 0.0
        %549 = vmatprep.subr.mxu0 0.0
        %550 = vmatpush1.msra.mxu0 0.0
        %551 = vmatprep.subr.mxu0 0.0
        %552 = vmatpush1.msra.mxu0 0.0
        %553 = vmatprep.mubr.f32.mxu0 0.0
        %554 = vmatmul.mubr.f32.gmra.mrb[0].mxu0 %v416
        %v555 = vpop.f32.mrb[0].mxu0
        %v556 = vadd.f32 %v412, %v555
        %v557 = vpop.f32.mrb[0].mxu0
        %558 = vdwg.mxu0
        %v559 = vld [vmem:[%s5] sm:$0x7]
        %v561 = vlaneseq
        %v562 = vshrl.u32 %v561, 7
        %v563 = vsub.s32 0, %v562
        %v564 = vrot.slane %v559, %v563
        %v565 = vlaneseq
        %v566 = vshrl.u32 %v565, 7
        %v567 = vsub.s32 1, %v566
        %v568 = vrot.slane %v559, %v567
        %v569 = vlaneseq
        %v570 = vshrl.u32 %v569, 7
        %v571 = vsub.s32 2, %v570
        %v572 = vrot.slane %v559, %v571
        %v576 = vmul.f32 %v485, %v564
        %v577 = vmul.f32 %v487, %v568
        %v578 = vmul.f32 %v556, %v572
        %v579 = vadd.f32 %v576, %v577
        %v580 = vadd.f32 %v579, %v578
        %581 = vadd.xlane.f32.xlu0 %v580
        %v582 = vpop.xlane.xlu0 %581
        %vm583 = vcmask 7168
        %v584 = vsel %vm583, %v582, 0.0
        %585 = vadd.xlane.f32.xlu0 %v584
        %v586 = vpop.xlane.xlu0 %585
        %v587 = vrot.slane %v586, 4
        %v588 = vadd.f32 %v586, %v587
        %v589 = vrot.slane %v588, 2
        %v590 = vadd.f32 %v588, %v589
        %v591 = vrot.slane %v590, 1
        %v592 = vadd.f32 %v590, %v591
        %s593 = vtos %v592
        %s594 = smul.f32 %s593, 0.00048828125
        %v595 = vstv %s594
        %v596 = vsub.f32 %v485, %v595
        %v597 = vsub.f32 %v487, %v595
        %v598 = vsub.f32 %v556, %v595
        %v599 = vmul.f32 %v596, %v564
        %v600 = vmul.f32 %v597, %v568
        %v601 = vmul.f32 %v598, %v572
        %v602 = vmul.f32 %v599, %v599
        %v603 = vmul.f32 %v600, %v600
        %v604 = vmul.f32 %v601, %v601
        %v605 = vadd.f32 %v602, %v603
        %v606 = vadd.f32 %v605, %v604
        %607 = vadd.xlane.f32.xlu0 %v606
        %v608 = vpop.xlane.xlu0 %607
        %v609 = vsel %vm583, %v608, 0.0
        %610 = vadd.xlane.f32.xlu0 %v609
        %v611 = vpop.xlane.xlu0 %610
        %v612 = vrot.slane %v611, 4
        %v613 = vadd.f32 %v611, %v612
        %v614 = vrot.slane %v613, 2
        %v615 = vadd.f32 %v613, %v614
        %v616 = vrot.slane %v615, 1
        %v617 = vadd.f32 %v615, %v616
        %s618 = vtos %v617
        %s619 = smul.f32 %s618, 0.00048828125
        %s620 = sadd.f32 %s619, 1e-05
        %v621 = vstv %s620
        %v622 = vrsqrt.pop %v621
        %s623 = vtos %v622
        %v624 = vld [vmem:[%s3] sm:$0xff]
        %v625 = vstv %s623
        %v626 = vmul.f32 %v624, %v625
        %v627 = vld [vmem:[%s4] sm:$0xff]
        %v628 = vmul.f32 %v595, %v626
        %v629 = vsub.f32 %v627, %v628
        %631 = vset.pattern.permute.xlu0 0
        %632 = vperm.xlu0 %631, %v626
        %v633 = vpop.permute.xlu0 %632
        %v635 = vmul.f32 %v485, %v633
        %v636 = vmul.f32 %v487, %v633
        %v637 = vmul.f32 %v556, %v633
        %639 = vset.pattern.permute.xlu0 0
        %640 = vperm.xlu0 %639, %v629
        %v641 = vpop.permute.xlu0 %640
        %v643 = vadd.f32 %v635, %v641
        %v644 = vadd.f32 %v636, %v641
        %v645 = vadd.f32 %v637, %v641
        %v646 = vmul.f32 %v643, 0.02
        %v647 = vmul.f32 %v644, 0.02
        %v648 = vmul.f32 %v645, 0.02
        %v649 = vmax.f32 %v643, %v646
        %v650 = vmax.f32 %v644, %v647
        %v651 = vmax.f32 %v645, %v648
        %652 = vst [vmem:[%s267] sm:$0xff] %v649
        %653 = vst [vmem:[%s267 + $0x8] sm:$0xff] %v650
        %654 = vst [vmem:[%s267 + $0x10] sm:$0xff] %v651
        %s655 = sand.u32 %s162, 1
        %s656 = scalar_lea.sflag [#allocation5], %s655
        %s657 = sand.u32 %s162, 1
        %s658 = smul.addr %s657, 24
        %s659 = scalar_lea.vmem [#allocation6], %s658
        // Predicated region
        $region49: #{tpu_custom_call.1} parent=43 // pred_check
          %p660 = pneg %p172
        $region50: #{tpu_custom_call.1} parent=43 // pred_check_branch
          %662 = sbr.rel (%p660) target = $region52
        $region51: #{tpu_custom_call.1} parent=43 // pred_region
          %s664 = ssub.s32 384, 384
          %665 = vsyncadd %s656, %s664
          %s666 = smul.addr %s23, 3
          %s667 = smul.addr %s666, 128
          %s668 = scalar_lea.hbm %s6, %s667
          %s670 = sshll.u32 %s659, 4
          %s671 = int_to_ptr.vmem [resolvable:$true] %s670
          %673 = dma.vmem_to_hbm [thread:$0]  %s671, 384, %s668, %s656
        $region52: #{tpu_custom_call.1} parent=43 // pred_fallthru
          _
      $region44: #{tpu_custom_call.1} parent=5 // pred_fallthru
        _
      %p674 = scmp.le.s32.totalorder 2, %s18
      // Predicated region
      $region53: #{tpu_custom_call.1} parent=5 // pred_check
        %p675 = pneg %p674
      $region54: #{tpu_custom_call.1} parent=5 // pred_check_branch
        %677 = sbr.rel (%p675) target = $region56
      $region55: #{tpu_custom_call.1} parent=5 // pred_region
        %s678 = ssub.s32 %s18, 2
        // Predicated region
        $region57: #{tpu_custom_call.1} parent=55 // pred_check
          %p679 = pneg %p178
        $region58: #{tpu_custom_call.1} parent=55 // pred_check_branch
          %681 = sbr.rel (%p679) target = $region60
        $region59: #{tpu_custom_call.1} parent=55 // pred_region
          %s682 = sand.u32 %s163, 1
          %s683 = scalar_lea.sflag [#allocation5], %s682
          %s684 = sand.u32 %s163, 1
          %s685 = smul.addr %s684, 24
          %s686 = scalar_lea.vmem [#allocation6], %s685
          %687 = dma.done %s683, 384
        $region60: #{tpu_custom_call.1} parent=55 // pred_fallthru
          _
      $region56: #{tpu_custom_call.1} parent=5 // pred_fallthru
        _
    $region6: #{tpu_custom_call.1} parent=1 // loop_footer
      %s22 = sadd.s32 1, %s18
    $region7: #{tpu_custom_call.1} parent=1 // loop_footer_branch
      %17 = sbr.rel target = $region3
    $region8: #{tpu_custom_call.1} parent=1 // loop_exit
      _
    %688 = vsyncpa [#allocation4], 1
    %s689 = scalar_lea.sflag [#allocation4], 1
    %690 = vsyncpa %s689, 1
    %691 = vsyncpa [#allocation5], 1
    %s692 = scalar_lea.sflag [#allocation5], 1
    %693 = vsyncpa %s692, 1

</llo_original>
